<compile_context>
chip_gen: v5e
topology: v5e:2x2
jax: 0.10.0
libtpu: 0.0.40
codegen_flags: <defaults>
</compile_context>

<pallas_src>
import functools

import jax
import jax.numpy as jnp
from jax import lax
from jax.experimental import pallas as pl
from jax.experimental.pallas import tpu as pltpu


# ----------------------------------------------------------------------------
# Fused Pallas kernel (no grid: one invocation, in-kernel time loop)
# ----------------------------------------------------------------------------
def fused_dalstm_kernel(x2d_ref,                    # (T*Bp, F)   bf16  time-major, flattened
                        wih1_ref, b1_ref, whh1_ref, # (F,G) bf16, (1,G) f32, (Hp,G) bf16
                        wih2_ref, b2_ref, whh2_ref, # (Hp,G) bf16, (1,G) f32, (Hp,G) bf16
                        scale_ref, shift_ref,       # (T,) f32 in SMEM  (folded eval-BN)
                        wlin_ref, blin_ref,         # (Hp,1) f32, (1,1) f32
                        yhat_ref,                   # out: (Bp, 1) f32
                        gx_scr, seq_scr,            # VMEM scratch: (T*Bp,G) f32, (T*Bp,Hp) f32
                        *, n_layers, seq_len, bp, hp):
    def run_layer(h0, c0, whh_ref):
        """One LSTM layer over the whole sequence. gx_scr holds the precomputed
        input projection (+ bias); only h @ W_hh is on the per-step critical path."""
        def step(t, carry):
            h, c = carry
            row = pl.multiple_of(t * bp, bp)
            g = gx_scr[pl.ds(row, bp), :] + jnp.dot(
                h.astype(jnp.bfloat16), whh_ref[...],
                preferred_element_type=jnp.float32)          # (Bp, 4Hp)
            # Gate slices are 128-lane aligned because hp is a multiple of 128.
            i_g = jax.nn.sigmoid(g[:, 0 * hp:1 * hp])
            f_g = jax.nn.sigmoid(g[:, 1 * hp:2 * hp])
            g_g = jnp.tanh(g[:, 2 * hp:3 * hp])
            o_g = jax.nn.sigmoid(g[:, 3 * hp:4 * hp])
            c = f_g * c + i_g * g_g
            h = o_g * jnp.tanh(c)
            # Fused eval-mode BatchNorm1d (channel = time) + eval-mode dropout (identity).
            seq_scr[pl.ds(row, bp), :] = h * scale_ref[t] + shift_ref[t]
            return (h, c)
        return lax.fori_loop(0, seq_len, step, (h0, c0))

    # ---- layer 1: hoisted input projection (single big MXU matmul), then recurrence.
    gx_scr[...] = (jnp.dot(x2d_ref[...], wih1_ref[...],
                           preferred_element_type=jnp.float32) + b1_ref[...])
    zeros = jnp.zeros((bp, hp), jnp.float32)
    h, c = run_layer(zeros, zeros, whh1_ref)

    # ---- layers 2..n_layers: shared lstm2 weights, initial state = previous final state.
    for _ in range(n_layers - 1):
        gx_scr[...] = (jnp.dot(seq_scr[...].astype(jnp.bfloat16), wih2_ref[...],
                               preferred_element_type=jnp.float32) + b2_ref[...])
        h, c = run_layer(h, c, whh2_ref)

    # ---- BN at the last timestep + linear head (fused; single tiny store).
    y_last = h * scale_ref[seq_len - 1] + shift_ref[seq_len - 1]
    yhat_ref[...] = (jnp.dot(y_last, wlin_ref[...],
                             preferred_element_type=jnp.float32) + blin_ref[...])


# ----------------------------------------------------------------------------
# Wrapper
# ----------------------------------------------------------------------------
@functools.partial(jax.jit, static_argnames=("n_layers",))
def dalstm_forward(x, packed, n_layers):
    """x: (B, T, input_size) batch-first (like the PyTorch module). Returns (B,)."""
    x = x.astype(jnp.float32)
    B, T, F = x.shape
    Hp = packed["whh1"].shape[0]            # hidden padded to a multiple of 128
    G = 4 * Hp
    Bp = ((B + 7) // 8) * 8                 # batch padded to a sublane multiple

    if Bp != B:
        x = jnp.zeros((Bp, T, F), jnp.float32).at[:B].set(x)
    # time-major, flattened to 2D so every in-kernel matmul / slice stays 2D & aligned
    x2d = jnp.transpose(x, (1, 0, 2)).reshape(T * Bp, F).astype(jnp.bfloat16)

    vmem = pl.BlockSpec(memory_space=pltpu.MemorySpace.VMEM)
    smem = pl.BlockSpec(memory_space=pltpu.MemorySpace.SMEM)

    yhat = pl.pallas_call(
        functools.partial(fused_dalstm_kernel,
                          n_layers=n_layers, seq_len=T, bp=Bp, hp=Hp),
        out_shape=jax.ShapeDtypeStruct((Bp, 1), jnp.float32),
        in_specs=[vmem,                       # x2d
                  vmem, vmem, vmem,           # wih1, b1, whh1
                  vmem, vmem, vmem,           # wih2, b2, whh2
                  smem, smem,                 # scale, shift (per-timestep scalars)
                  vmem, vmem],                # w_lin, b_lin
        out_specs=vmem,
        scratch_shapes=[pltpu.VMEM((T * Bp, G), jnp.float32),   # precomputed gate inputs
                        pltpu.VMEM((T * Bp, Hp), jnp.float32)], # BN'd layer output sequence
        compiler_params=pltpu.CompilerParams(vmem_limit_bytes=32 * 1024 * 1024),
    )(x2d,
      packed["wih1"], packed["b1"], packed["whh1"],
      packed["wih2"], packed["b2"], packed["whh2"],
      packed["scale"], packed["shift"],
      packed["w_lin"], packed["b_lin"])

    return yhat[:B, 0]                        # squeeze(dim=1), drop batch padding


# ----------------------------------------------------------------------------
# One-time parameter packing: gate-block lane padding (H -> Hp multiple of 128),
# bf16 matmul weights, eval-BN folded to per-timestep (scale, shift).
# ----------------------------------------------------------------------------
def pack_params(params, eps=1e-5):
    H = params["whh1"].shape[0]
    Hp = ((H + 127) // 128) * 128
    G = 4 * Hp

    def place_gates(w):                       # (rows, 4H) -> (rows, 4Hp), gate order [i,f,g,o]
        rows = w.shape[0]
        out = jnp.zeros((rows, G), jnp.float32)
        for g in range(4):
            out = out.at[:, g * Hp:g * Hp + H].set(w[:, g * H:(g + 1) * H])
        return out

    def pad_rows(w, rp):                      # zero-pad the input/row dim
        return jnp.zeros((rp,) + w.shape[1:], jnp.float32).at[:w.shape[0]].set(w)

    scale = params["bn_gamma"] / jnp.sqrt(params["bn_var"] + eps)
    shift = params["bn_beta"] - params["bn_mean"] * scale

    return {
        "wih1": place_gates(params["wih1"]).astype(jnp.bfloat16),
        "b1":   place_gates(params["b1"]),
        "whh1": place_gates(pad_rows(params["whh1"], Hp)).astype(jnp.bfloat16),
        "wih2": place_gates(pad_rows(params["wih2"], Hp)).astype(jnp.bfloat16),
        "b2":   place_gates(params["b2"]),
        "whh2": place_gates(pad_rows(params["whh2"], Hp)).astype(jnp.bfloat16),
        "w_lin": pad_rows(params["w_lin"], Hp).astype(jnp.float32),
        "b_lin": params["b_lin"].astype(jnp.float32),
        "scale": scale.astype(jnp.float32),
        "shift": shift.astype(jnp.float32),
    }


# ----------------------------------------------------------------------------
# Pure-JAX f32 reference (module semantics, eval mode) for correctness check
# ----------------------------------------------------------------------------
def _ref_lstm_layer(x, wih, whh, b, h0, c0):
    def step(carry, x_t):
        h, c = carry
        gates = x_t @ wih + h @ whh + b[0]
        i, f, g, o = jnp.split(gates, 4, axis=-1)
        i, f, o = jax.nn.sigmoid(i), jax.nn.sigmoid(f), jax.nn.sigmoid(o)
        g = jnp.tanh(g)
        c = f * c + i * g
        h = o * jnp.tanh(c)
        return (h, c), h
    (hT, cT), hs = lax.scan(step, (h0, c0), jnp.transpose(x, (1, 0, 2)))
    return jnp.transpose(hs, (1, 0, 2)), hT, cT


def _ref_forward(x, params, n_layers):
    x = x.astype(jnp.float32)
    B, T, _ = x.shape
    H = params["whh1"].shape[0]
    eps = 1e-5
    h0 = jnp.zeros((B, H), jnp.float32)
    c0 = jnp.zeros((B, H), jnp.float32)

    def bn(y):                                # eval-mode BatchNorm1d, channel dim = T
        m = params["bn_mean"][None, :, None]
        v = params["bn_var"][None, :, None]
        g = params["bn_gamma"][None, :, None]
        b_ = params["bn_beta"][None, :, None]
        return (y - m) / jnp.sqrt(v + eps) * g + b_

    y, h, c = _ref_lstm_layer(x, params["wih1"], params["whh1"], params["b1"], h0, c0)
    y = bn(y)
    for _ in range(n_layers - 1):
        y, h, c = _ref_lstm_layer(y, params["wih2"], params["whh2"], params["b2"], h, c)
        y = bn(y)
    yhat = y[:, -1, :] @ params["w_lin"] + params["b_lin"]
    return yhat[:, 0]


# ----------------------------------------------------------------------------
# Deterministic parameter init (shapes from the PyTorch __init__)
# ----------------------------------------------------------------------------
def init_params(key, input_size, hidden_size, max_len):
    H = hidden_size
    ks = jax.random.split(key, 12)
    bound = 1.0 / jnp.sqrt(H)
    u = lambda k, shp: jax.random.uniform(k, shp, jnp.float32, -bound, bound)
    return {
        # lstm1: W_ih (4H,F)->(F,4H), W_hh (4H,H)->(H,4H), b = b_ih + b_hh
        "wih1": u(ks[0], (input_size, 4 * H)),
        "whh1": u(ks[1], (H, 4 * H)),
        "b1":   u(ks[2], (1, 4 * H)),
        # lstm2
        "wih2": u(ks[3], (H, 4 * H)),
        "whh2": u(ks[4], (H, 4 * H)),
        "b2":   u(ks[5], (1, 4 * H)),
        # batch_norm1 (num_features = max_len), eval-mode running stats
        "bn_gamma": jax.random.uniform(ks[6], (max_len,), jnp.float32, 0.5, 1.5),
        "bn_beta":  jax.random.uniform(ks[7], (max_len,), jnp.float32, -0.1, 0.1),
        "bn_mean":  jax.random.uniform(ks[8], (max_len,), jnp.float32, -0.1, 0.1),
        "bn_var":   jax.random.uniform(ks[9], (max_len,), jnp.float32, 0.5, 1.5),
        # linear1: (H, 1), bias (1, 1)
        "w_lin": u(ks[10], (H, 1)),
        "b_lin": u(ks[11], (1, 1)),
    }


if __name__ == "__main__":
    B, T, F, H = 8, 8, 16, 32          # batch, max_len (seq), input_size, hidden
    N_LAYERS = 2

    key = jax.random.PRNGKey(0)
    k_x, k_p = jax.random.split(key)
    x = jax.random.normal(k_x, (B, T, F), jnp.float32)
    params = init_params(k_p, input_size=F, hidden_size=H, max_len=T)
    packed = pack_params(params)

    yhat = dalstm_forward(x, packed, n_layers=N_LAYERS)
    yhat = jax.block_until_ready(yhat)
    assert yhat.shape == (B,), yhat.shape

    ref = _ref_forward(x, params, N_LAYERS)
    # bf16 matmul operands (f32 accumulation) -> loose-but-safe tolerance vs f32 reference.
    assert jnp.allclose(yhat, ref, atol=2e-2, rtol=2e-2), (yhat, ref)

    print("KERNEL_OK")
</pallas_src>

<mosaic_0001>
module attributes {stable_mosaic.version = 11 : i64} {
  func.func @fused_dalstm_kernel(%arg0: memref<64x16xbf16, #tpu.memory_space<vmem>>, %arg1: memref<16x512xbf16, #tpu.memory_space<vmem>>, %arg2: memref<1x512xf32, #tpu.memory_space<vmem>>, %arg3: memref<128x512xbf16, #tpu.memory_space<vmem>>, %arg4: memref<128x512xbf16, #tpu.memory_space<vmem>>, %arg5: memref<1x512xf32, #tpu.memory_space<vmem>>, %arg6: memref<128x512xbf16, #tpu.memory_space<vmem>>, %arg7: memref<8xf32, #tpu.memory_space<smem>>, %arg8: memref<8xf32, #tpu.memory_space<smem>>, %arg9: memref<128x1xf32, #tpu.memory_space<vmem>>, %arg10: memref<1x1xf32, #tpu.memory_space<vmem>>, %arg11: memref<8x1xf32, #tpu.memory_space<vmem>>, %arg12: memref<64x512xf32, #tpu.memory_space<vmem>>, %arg13: memref<64x128xf32, #tpu.memory_space<vmem>>) attributes {dimension_semantics = [], scalar_prefetch = 0 : i64, scratch_operands = 2 : i64, tpu.core_type = #tpu.core_type<tc>} {
    %c0 = arith.constant 0 : index
    %c0_0 = arith.constant 0 : index
    %0 = vector.load %arg0[%c0, %c0_0] : memref<64x16xbf16, #tpu.memory_space<vmem>>, vector<64x16xbf16>
    %c0_1 = arith.constant 0 : index
    %c0_2 = arith.constant 0 : index
    %1 = vector.load %arg1[%c0_1, %c0_2] : memref<16x512xbf16, #tpu.memory_space<vmem>>, vector<16x512xbf16>
    %cst = arith.constant dense<0.000000e+00> : vector<64x512xf32>
    %2 = tpu.matmul %0, %1, %cst {dimension_numbers = #tpu.dot_dimension_numbers<[1], [0], [0], [1], [0, 0, 1, 1], [], []>} : vector<64x16xbf16>, vector<16x512xbf16>, vector<64x512xf32> -> vector<64x512xf32>
    %c0_3 = arith.constant 0 : index
    %c0_4 = arith.constant 0 : index
    %3 = vector.load %arg2[%c0_3, %c0_4] : memref<1x512xf32, #tpu.memory_space<vmem>>, vector<1x512xf32>
    %4 = vector.broadcast %3 : vector<1x512xf32> to vector<64x512xf32>
    %5 = arith.addf %2, %4 : vector<64x512xf32>
    %c0_5 = arith.constant 0 : index
    %c0_6 = arith.constant 0 : index
    %6 = vector.load %arg12[%c0_5, %c0_6] : memref<64x512xf32, #tpu.memory_space<vmem>>, vector<64x512xf32>
    tpu.vector_store %arg12[%c0_5, %c0_6], %5 {strides = array<i32>} : memref<64x512xf32, #tpu.memory_space<vmem>>, vector<64x512xf32>,
    %cst_7 = arith.constant 0.000000e+00 : f32
    %7 = vector.broadcast %cst_7 : f32 to vector<8x128xf32>
    %c0_i32 = arith.constant 0 : i32
    %c8_i32 = arith.constant 8 : i32
    %8 = arith.addi %c0_i32, %c8_i32 : i32
    %c1_i32 = arith.constant 1 : i32
    %9:2 = scf.for %arg14 = %c0_i32 to %8 step %c1_i32 iter_args(%arg15 = %7, %arg16 = %7) -> (vector<8x128xf32>, vector<8x128xf32>)  : i32 {
      %c8_i32_30 = arith.constant 8 : i32
      %32 = arith.muli %arg14, %c8_i32_30 : i32
      %33 = tpu.assume_multiple %32, 8 : i32
      %34 = arith.index_cast %33 : i32 to index
      %c0_31 = arith.constant 0 : index
      %35 = vector.load %arg12[%34, %c0_31] : memref<64x512xf32, #tpu.memory_space<vmem>>, vector<8x512xf32>
      %36 = arith.truncf %arg15 : vector<8x128xf32> to vector<8x128xbf16>
      %c0_32 = arith.constant 0 : index
      %c0_33 = arith.constant 0 : index
      %37 = vector.load %arg3[%c0_32, %c0_33] : memref<128x512xbf16, #tpu.memory_space<vmem>>, vector<128x512xbf16>
      %cst_34 = arith.constant dense<0.000000e+00> : vector<8x512xf32>
      %38 = tpu.matmul %36, %37, %cst_34 {dimension_numbers = #tpu.dot_dimension_numbers<[1], [0], [0], [1], [0, 0, 1, 1], [], []>} : vector<8x128xbf16>, vector<128x512xbf16>, vector<8x512xf32> -> vector<8x512xf32>
      %39 = arith.addf %35, %38 : vector<8x512xf32>
      %40 = vector.extract_strided_slice %39 {offsets = [0, 0], sizes = [8, 128], strides = [1, 1]} : vector<8x512xf32> to vector<8x128xf32>
      %41 = arith.negf %40 : vector<8x128xf32>
      %42 = math.exp %41 : vector<8x128xf32>
      %cst_35 = arith.constant 1.000000e+00 : f32
      %43 = vector.broadcast %cst_35 : f32 to vector<8x128xf32>
      %44 = arith.addf %43, %42 : vector<8x128xf32>
      %45 = arith.divf %43, %44 : vector<8x128xf32>
      %46 = vector.extract_strided_slice %39 {offsets = [0, 128], sizes = [8, 128], strides = [1, 1]} : vector<8x512xf32> to vector<8x128xf32>
      %47 = arith.negf %46 : vector<8x128xf32>
      %48 = math.exp %47 : vector<8x128xf32>
      %cst_36 = arith.constant 1.000000e+00 : f32
      %49 = vector.broadcast %cst_36 : f32 to vector<8x128xf32>
      %50 = arith.addf %49, %48 : vector<8x128xf32>
      %51 = arith.divf %49, %50 : vector<8x128xf32>
      %52 = vector.extract_strided_slice %39 {offsets = [0, 256], sizes = [8, 128], strides = [1, 1]} : vector<8x512xf32> to vector<8x128xf32>
      %53 = math.tanh %52 : vector<8x128xf32>
      %54 = vector.extract_strided_slice %39 {offsets = [0, 384], sizes = [8, 128], strides = [1, 1]} : vector<8x512xf32> to vector<8x128xf32>
      %55 = arith.negf %54 : vector<8x128xf32>
      %56 = math.exp %55 : vector<8x128xf32>
      %cst_37 = arith.constant 1.000000e+00 : f32
      %57 = vector.broadcast %cst_37 : f32 to vector<8x128xf32>
      %58 = arith.addf %57, %56 : vector<8x128xf32>
      %59 = arith.divf %57, %58 : vector<8x128xf32>
      %60 = arith.mulf %51, %arg16 : vector<8x128xf32>
      %61 = arith.mulf %45, %53 : vector<8x128xf32>
      %62 = arith.addf %60, %61 : vector<8x128xf32>
      %63 = math.tanh %62 : vector<8x128xf32>
      %64 = arith.mulf %59, %63 : vector<8x128xf32>
      %65 = arith.index_cast %arg14 : i32 to index
      %66 = memref.load %arg7[%65] : memref<8xf32, #tpu.memory_space<smem>>
      %67 = vector.broadcast %66 : f32 to vector<8x128xf32>
      %68 = arith.mulf %64, %67 : vector<8x128xf32>
      %69 = arith.index_cast %arg14 : i32 to index
      %70 = memref.load %arg8[%69] : memref<8xf32, #tpu.memory_space<smem>>
      %71 = vector.broadcast %70 : f32 to vector<8x128xf32>
      %72 = arith.addf %68, %71 : vector<8x128xf32>
      %73 = arith.index_cast %33 : i32 to index
      %c0_38 = arith.constant 0 : index
      %74 = vector.load %arg13[%73, %c0_38] : memref<64x128xf32, #tpu.memory_space<vmem>>, vector<8x128xf32>
      tpu.vector_store %arg13[%73, %c0_38], %72 {strides = array<i32>} : memref<64x128xf32, #tpu.memory_space<vmem>>, vector<8x128xf32>,
      scf.yield %64, %62 : vector<8x128xf32>, vector<8x128xf32>
    }
    %c8_i32_8 = arith.constant 8 : i32
    %c0_9 = arith.constant 0 : index
    %c0_10 = arith.constant 0 : index
    %10 = vector.load %arg13[%c0_9, %c0_10] : memref<64x128xf32, #tpu.memory_space<vmem>>, vector<64x128xf32>
    %11 = arith.truncf %10 : vector<64x128xf32> to vector<64x128xbf16>
    %c0_11 = arith.constant 0 : index
    %c0_12 = arith.constant 0 : index
    %12 = vector.load %arg4[%c0_11, %c0_12] : memref<128x512xbf16, #tpu.memory_space<vmem>>, vector<128x512xbf16>
    %cst_13 = arith.constant dense<0.000000e+00> : vector<64x512xf32>
    %13 = tpu.matmul %11, %12, %cst_13 {dimension_numbers = #tpu.dot_dimension_numbers<[1], [0], [0], [1], [0, 0, 1, 1], [], []>} : vector<64x128xbf16>, vector<128x512xbf16>, vector<64x512xf32> -> vector<64x512xf32>
    %c0_14 = arith.constant 0 : index
    %c0_15 = arith.constant 0 : index
    %14 = vector.load %arg5[%c0_14, %c0_15] : memref<1x512xf32, #tpu.memory_space<vmem>>, vector<1x512xf32>
    %15 = vector.broadcast %14 : vector<1x512xf32> to vector<64x512xf32>
    %16 = arith.addf %13, %15 : vector<64x512xf32>
    %c0_16 = arith.constant 0 : index
    %c0_17 = arith.constant 0 : index
    %17 = vector.load %arg12[%c0_16, %c0_17] : memref<64x512xf32, #tpu.memory_space<vmem>>, vector<64x512xf32>
    tpu.vector_store %arg12[%c0_16, %c0_17], %16 {strides = array<i32>} : memref<64x512xf32, #tpu.memory_space<vmem>>, vector<64x512xf32>,
    %c0_i32_18 = arith.constant 0 : i32
    %c8_i32_19 = arith.constant 8 : i32
    %18 = arith.addi %c0_i32_18, %c8_i32_19 : i32
    %c1_i32_20 = arith.constant 1 : i32
    %19:2 = scf.for %arg14 = %c0_i32_18 to %18 step %c1_i32_20 iter_args(%arg15 = %9#0, %arg16 = %9#1) -> (vector<8x128xf32>, vector<8x128xf32>)  : i32 {
      %c8_i32_30 = arith.constant 8 : i32
      %32 = arith.muli %arg14, %c8_i32_30 : i32
      %33 = tpu.assume_multiple %32, 8 : i32
      %34 = arith.index_cast %33 : i32 to index
      %c0_31 = arith.constant 0 : index
      %35 = vector.load %arg12[%34, %c0_31] : memref<64x512xf32, #tpu.memory_space<vmem>>, vector<8x512xf32>
      %36 = arith.truncf %arg15 : vector<8x128xf32> to vector<8x128xbf16>
      %c0_32 = arith.constant 0 : index
      %c0_33 = arith.constant 0 : index
      %37 = vector.load %arg6[%c0_32, %c0_33] : memref<128x512xbf16, #tpu.memory_space<vmem>>, vector<128x512xbf16>
      %cst_34 = arith.constant dense<0.000000e+00> : vector<8x512xf32>
      %38 = tpu.matmul %36, %37, %cst_34 {dimension_numbers = #tpu.dot_dimension_numbers<[1], [0], [0], [1], [0, 0, 1, 1], [], []>} : vector<8x128xbf16>, vector<128x512xbf16>, vector<8x512xf32> -> vector<8x512xf32>
      %39 = arith.addf %35, %38 : vector<8x512xf32>
      %40 = vector.extract_strided_slice %39 {offsets = [0, 0], sizes = [8, 128], strides = [1, 1]} : vector<8x512xf32> to vector<8x128xf32>
      %41 = arith.negf %40 : vector<8x128xf32>
      %42 = math.exp %41 : vector<8x128xf32>
      %cst_35 = arith.constant 1.000000e+00 : f32
      %43 = vector.broadcast %cst_35 : f32 to vector<8x128xf32>
      %44 = arith.addf %43, %42 : vector<8x128xf32>
      %45 = arith.divf %43, %44 : vector<8x128xf32>
      %46 = vector.extract_strided_slice %39 {offsets = [0, 128], sizes = [8, 128], strides = [1, 1]} : vector<8x512xf32> to vector<8x128xf32>
      %47 = arith.negf %46 : vector<8x128xf32>
      %48 = math.exp %47 : vector<8x128xf32>
      %cst_36 = arith.constant 1.000000e+00 : f32
      %49 = vector.broadcast %cst_36 : f32 to vector<8x128xf32>
      %50 = arith.addf %49, %48 : vector<8x128xf32>
      %51 = arith.divf %49, %50 : vector<8x128xf32>
      %52 = vector.extract_strided_slice %39 {offsets = [0, 256], sizes = [8, 128], strides = [1, 1]} : vector<8x512xf32> to vector<8x128xf32>
      %53 = math.tanh %52 : vector<8x128xf32>
      %54 = vector.extract_strided_slice %39 {offsets = [0, 384], sizes = [8, 128], strides = [1, 1]} : vector<8x512xf32> to vector<8x128xf32>
      %55 = arith.negf %54 : vector<8x128xf32>
      %56 = math.exp %55 : vector<8x128xf32>
      %cst_37 = arith.constant 1.000000e+00 : f32
      %57 = vector.broadcast %cst_37 : f32 to vector<8x128xf32>
      %58 = arith.addf %57, %56 : vector<8x128xf32>
      %59 = arith.divf %57, %58 : vector<8x128xf32>
      %60 = arith.mulf %51, %arg16 : vector<8x128xf32>
      %61 = arith.mulf %45, %53 : vector<8x128xf32>
      %62 = arith.addf %60, %61 : vector<8x128xf32>
      %63 = math.tanh %62 : vector<8x128xf32>
      %64 = arith.mulf %59, %63 : vector<8x128xf32>
      %65 = arith.index_cast %arg14 : i32 to index
      %66 = memref.load %arg7[%65] : memref<8xf32, #tpu.memory_space<smem>>
      %67 = vector.broadcast %66 : f32 to vector<8x128xf32>
      %68 = arith.mulf %64, %67 : vector<8x128xf32>
      %69 = arith.index_cast %arg14 : i32 to index
      %70 = memref.load %arg8[%69] : memref<8xf32, #tpu.memory_space<smem>>
      %71 = vector.broadcast %70 : f32 to vector<8x128xf32>
      %72 = arith.addf %68, %71 : vector<8x128xf32>
      %73 = arith.index_cast %33 : i32 to index
      %c0_38 = arith.constant 0 : index
      %74 = vector.load %arg13[%73, %c0_38] : memref<64x128xf32, #tpu.memory_space<vmem>>, vector<8x128xf32>
      tpu.vector_store %arg13[%73, %c0_38], %72 {strides = array<i32>} : memref<64x128xf32, #tpu.memory_space<vmem>>, vector<8x128xf32>,
      scf.yield %64, %62 : vector<8x128xf32>, vector<8x128xf32>
    }
    %c8_i32_21 = arith.constant 8 : i32
    %c7 = arith.constant 7 : index
    %20 = memref.load %arg7[%c7] : memref<8xf32, #tpu.memory_space<smem>>
    %21 = vector.broadcast %20 : f32 to vector<8x128xf32>
    %22 = arith.mulf %19#0, %21 : vector<8x128xf32>
    %c7_22 = arith.constant 7 : index
    %23 = memref.load %arg8[%c7_22] : memref<8xf32, #tpu.memory_space<smem>>
    %24 = vector.broadcast %23 : f32 to vector<8x128xf32>
    %25 = arith.addf %22, %24 : vector<8x128xf32>
    %c0_23 = arith.constant 0 : index
    %c0_24 = arith.constant 0 : index
    %26 = vector.load %arg9[%c0_23, %c0_24] : memref<128x1xf32, #tpu.memory_space<vmem>>, vector<128x1xf32>
    %cst_25 = arith.constant dense<0.000000e+00> : vector<8x1xf32>
    %27 = tpu.matmul %25, %26, %cst_25 {dimension_numbers = #tpu.dot_dimension_numbers<[1], [0], [0], [1], [0, 0, 1, 1], [], []>} : vector<8x128xf32>, vector<128x1xf32>, vector<8x1xf32> -> vector<8x1xf32>
    %c0_26 = arith.constant 0 : index
    %c0_27 = arith.constant 0 : index
    %28 = vector.load %arg10[%c0_26, %c0_27] : memref<1x1xf32, #tpu.memory_space<vmem>>, vector<1x1xf32>
    %29 = vector.broadcast %28 : vector<1x1xf32> to vector<8x1xf32>
    %30 = arith.addf %27, %29 : vector<8x1xf32>
    %c0_28 = arith.constant 0 : index
    %c0_29 = arith.constant 0 : index
    %31 = vector.load %arg11[%c0_28, %c0_29] : memref<8x1xf32, #tpu.memory_space<vmem>>, vector<8x1xf32>
    tpu.vector_store %arg11[%c0_28, %c0_29], %30 {strides = array<i32>} : memref<8x1xf32, #tpu.memory_space<vmem>>, vector<8x1xf32>,
    return
  }
}

</mosaic_0001>

<llo_original>
// kernel: dalstm_forward.1
$region0: #{dalstm_forward.1}
  #allocation0 [shape = 'u32[]', space=smem, size = 0x4, offset = 0x4, fixed_abs, tag = 'smem constant byte address 0x4 - core index']
  #allocation1 [shape = 'u32[72,128]{1,0:T(1,128)}', space=vmem, size = 0x9000, scoped, tag = 'internal scratch']
  #allocation2 [shape = 'f32[64,512]{1,0:T(8,128)}', space=vmem, size = 0x20000, scoped, tag = 'scratch operand']
  #allocation3 [shape = 'f32[64,128]{1,0:T(8,128)}', space=vmem, size = 0x8000, scoped, tag = 'scratch operand']
  #allocation4 [shape = 'f32[1,1]{1,0:T(1,128)S(1)}', space=vmem, size = 0x200, scoped, tag = 'scoped memory for dalstm_forward.1']
  %s0 = inlined_call_operand.vmem [shape: bf16[64,16], index: 0, kind: input, shape index: {}]
  %s1 = inlined_call_operand.vmem [shape: bf16[16,512], index: 1, kind: input, shape index: {}]
  %s2 = inlined_call_operand.vmem [shape: f32[1,512], index: 2, kind: input, shape index: {}]
  %s3 = inlined_call_operand.hbm [shape: bf16[128,512], index: 3, kind: input, shape index: {}]
  %s4 = inlined_call_operand.hbm [shape: bf16[128,512], index: 4, kind: input, shape index: {}]
  %s5 = inlined_call_operand.vmem [shape: f32[1,512], index: 5, kind: input, shape index: {}]
  %s6 = inlined_call_operand.hbm [shape: bf16[128,512], index: 6, kind: input, shape index: {}]
  %s7 = inlined_call_operand.vmem [shape: f32[8], index: 7, kind: input, shape index: {}]
  %s8 = inlined_call_operand.vmem [shape: f32[8], index: 8, kind: input, shape index: {}]
  %s9 = inlined_call_operand.vmem [shape: f32[128,1], index: 9, kind: input, shape index: {}]
  %s10 = inlined_call_operand.<no memory space> [shape: f32[1,1], index: 10, kind: input, shape index: {}]
  %s11 = inlined_call_operand.vmem [shape: f32[8,1], index: 11, kind: output, shape index: {}]
  %s12 = sld [smem:[#allocation0]]
  $region88: #{dalstm_forward.1} parent=0
    _
  %s14 = ssub.s32 1, %s12
  %s15 = scalar_select 0, %s14, %s12
  %v16 = vstv %s10
  %17 = vst [vmem:[#allocation4] sm:$0x1] %v16
  $region1: #{dalstm_forward.1} parent=0
    #allocation5 [shape = 'u8[131072]{0}', space=vmem, size = 0x20000, scoped, tag = 'input window, operand 3, single buffered']
    #allocation6 [shape = 's32[1]{0}', space=sflag, size = 0x4, scoped, tag = 'scoped memory for dalstm_forward.1']
    #allocation7 [shape = 's32[1]{0}', space=sflag, size = 0x4, scoped, tag = 'scoped memory for dalstm_forward.1']
    #allocation8 [shape = 'u8[131072]{0}', space=vmem, size = 0x20000, scoped, tag = 'input window, operand 4, single buffered']
    #allocation9 [shape = 's32[1]{0}', space=sflag, size = 0x4, scoped, tag = 'scoped memory for dalstm_forward.1']
    #allocation10 [shape = 'u8[131072]{0}', space=vmem, size = 0x20000, scoped, tag = 'input window, operand 6, single buffered']
    #allocation11 [shape = 'u8[512]{0}', space=smem, size = 0x200, scoped, tag = 'input window, operand 7, single buffered']
    #allocation12 [shape = 'u8[512]{0}', space=smem, size = 0x200, scoped, tag = 'input window, operand 8, single buffered']
    #allocation13 [shape = 's32[1]{0}', space=sflag, size = 0x4, scoped, tag = 'scoped memory for dalstm_forward.1']
    %18 = vsyncpa [#allocation6], 0
    %19 = vsyncpa [#allocation9], 0
    %20 = vsyncpa [#allocation7], 0
    %21 = vsyncpa [#allocation13], 0
    // Predicated region
    $region2: #{dalstm_forward.1} parent=1 // pred_check
      _
    $region3: #{dalstm_forward.1} parent=1 // pred_check_branch
      %23 = sbr.rel (0) target = $region5
    $region4: #{dalstm_forward.1} parent=1 // pred_region
      _
    $region5: #{dalstm_forward.1} parent=1 // pred_fallthru
      _
    // Predicated region
    $region6: #{dalstm_forward.1} parent=1 // pred_check
      _
    $region7: #{dalstm_forward.1} parent=1 // pred_check_branch
      %25 = sbr.rel (0) target = $region9
    $region8: #{dalstm_forward.1} parent=1 // pred_region
      _
    $region9: #{dalstm_forward.1} parent=1 // pred_fallthru
      _
    // Predicated region
    $region10: #{dalstm_forward.1} parent=1 // pred_check
      _
    $region11: #{dalstm_forward.1} parent=1 // pred_check_branch
      %27 = sbr.rel (0) target = $region13
    $region12: #{dalstm_forward.1} parent=1 // pred_region
      _
    $region13: #{dalstm_forward.1} parent=1 // pred_fallthru
      _
    // Predicated region
    $region14: #{dalstm_forward.1} parent=1 // pred_check
      _
    $region15: #{dalstm_forward.1} parent=1 // pred_check_branch
      %29 = sbr.rel (0) target = $region17
    $region16: #{dalstm_forward.1} parent=1 // pred_region
      %31 = vsyncadd [#allocation6], 0
      %s32 = sshll.u32 %s3, 4
      %s33 = int_to_ptr.hbm [resolvable:$true] %s32
      %s34 = sshll.u32 [#allocation5], 4
      %s35 = int_to_ptr.vmem [resolvable:$true] %s34
      %40 = dma.hbm_to_vmem [thread:$0]  %s33, 4096, %s35, [#allocation6], 256, 256, 16
    $region17: #{dalstm_forward.1} parent=1 // pred_fallthru
      _
    // Predicated region
    $region18: #{dalstm_forward.1} parent=1 // pred_check
      _
    $region19: #{dalstm_forward.1} parent=1 // pred_check_branch
      %42 = sbr.rel (0) target = $region21
    $region20: #{dalstm_forward.1} parent=1 // pred_region
      %44 = vsyncadd [#allocation9], 0
      %s45 = sshll.u32 %s4, 4
      %s46 = int_to_ptr.hbm [resolvable:$true] %s45
      %s47 = sshll.u32 [#allocation8], 4
      %s48 = int_to_ptr.vmem [resolvable:$true] %s47
      %53 = dma.hbm_to_vmem [thread:$0]  %s46, 4096, %s48, [#allocation9], 256, 256, 16
    $region21: #{dalstm_forward.1} parent=1 // pred_fallthru
      _
    // Predicated region
    $region22: #{dalstm_forward.1} parent=1 // pred_check
      _
    $region23: #{dalstm_forward.1} parent=1 // pred_check_branch
      %55 = sbr.rel (0) target = $region25
    $region24: #{dalstm_forward.1} parent=1 // pred_region
      _
    $region25: #{dalstm_forward.1} parent=1 // pred_fallthru
      _
    // Predicated region
    $region26: #{dalstm_forward.1} parent=1 // pred_check
      _
    $region27: #{dalstm_forward.1} parent=1 // pred_check_branch
      %57 = sbr.rel (0) target = $region29
    $region28: #{dalstm_forward.1} parent=1 // pred_region
      %59 = vsyncadd [#allocation9], 0
      %s60 = sshll.u32 %s6, 4
      %s61 = int_to_ptr.hbm [resolvable:$true] %s60
      %s62 = sshll.u32 [#allocation10], 4
      %s63 = int_to_ptr.vmem [resolvable:$true] %s62
      %68 = dma.hbm_to_vmem [thread:$0]  %s61, 4096, %s63, [#allocation9], 256, 256, 16
    $region29: #{dalstm_forward.1} parent=1 // pred_fallthru
      _
    // Predicated region
    $region30: #{dalstm_forward.1} parent=1 // pred_check
      _
    $region31: #{dalstm_forward.1} parent=1 // pred_check_branch
      %70 = sbr.rel (0) target = $region33
    $region32: #{dalstm_forward.1} parent=1 // pred_region
      %72 = vsyncadd [#allocation7], 0
      %s74 = sshll.u32 %s7, 4
      %s75 = int_to_ptr.vmem [resolvable:$true] %s74
      %77 = dma.vmem_to_smem %s75, 16, [#allocation11], [#allocation7]
    $region33: #{dalstm_forward.1} parent=1 // pred_fallthru
      _
    // Predicated region
    $region34: #{dalstm_forward.1} parent=1 // pred_check
      _
    $region35: #{dalstm_forward.1} parent=1 // pred_check_branch
      %79 = sbr.rel (0) target = $region37
    $region36: #{dalstm_forward.1} parent=1 // pred_region
      %81 = vsyncadd [#allocation13], 0
      %s83 = sshll.u32 %s8, 4
      %s84 = int_to_ptr.vmem [resolvable:$true] %s83
      %86 = dma.vmem_to_smem %s84, 16, [#allocation12], [#allocation13]
    $region37: #{dalstm_forward.1} parent=1 // pred_fallthru
      _
    // Predicated region
    $region38: #{dalstm_forward.1} parent=1 // pred_check
      _
    $region39: #{dalstm_forward.1} parent=1 // pred_check_branch
      %88 = sbr.rel (0) target = $region41
    $region40: #{dalstm_forward.1} parent=1 // pred_region
      _
    $region41: #{dalstm_forward.1} parent=1 // pred_fallthru
      _
    // Predicated region
    $region42: #{dalstm_forward.1} parent=1 // pred_check
      _
    $region43: #{dalstm_forward.1} parent=1 // pred_check_branch
      %90 = sbr.rel (0) target = $region45
    $region44: #{dalstm_forward.1} parent=1 // pred_region
      _
    $region45: #{dalstm_forward.1} parent=1 // pred_fallthru
      _
    // Predicated region
    $region46: #{dalstm_forward.1} parent=1 // pred_check
      _
    $region47: #{dalstm_forward.1} parent=1 // pred_check_branch
      %92 = sbr.rel (0) target = $region49
    $region48: #{dalstm_forward.1} parent=1 // pred_region
      %94 = dma.done [#allocation6], 4096
    $region49: #{dalstm_forward.1} parent=1 // pred_fallthru
      _
    // Predicated region
    $region50: #{dalstm_forward.1} parent=1 // pred_check
      _
    $region51: #{dalstm_forward.1} parent=1 // pred_check_branch
      %96 = sbr.rel (0) target = $region53
    $region52: #{dalstm_forward.1} parent=1 // pred_region
      %98 = dma.done [#allocation9], 4096
    $region53: #{dalstm_forward.1} parent=1 // pred_fallthru
      _
    // Predicated region
    $region54: #{dalstm_forward.1} parent=1 // pred_check
      _
    $region55: #{dalstm_forward.1} parent=1 // pred_check_branch
      %100 = sbr.rel (0) target = $region57
    $region56: #{dalstm_forward.1} parent=1 // pred_region
      %102 = dma.done [#allocation9], 4096
    $region57: #{dalstm_forward.1} parent=1 // pred_fallthru
      _
    // Predicated region
    $region58: #{dalstm_forward.1} parent=1 // pred_check
      _
    $region59: #{dalstm_forward.1} parent=1 // pred_check_branch
      %104 = sbr.rel (0) target = $region61
    $region60: #{dalstm_forward.1} parent=1 // pred_region
      %106 = dma.done [#allocation7], 16
    $region61: #{dalstm_forward.1} parent=1 // pred_fallthru
      _
    // Predicated region
    $region62: #{dalstm_forward.1} parent=1 // pred_check
      _
    $region63: #{dalstm_forward.1} parent=1 // pred_check_branch
      %108 = sbr.rel (0) target = $region65
    $region64: #{dalstm_forward.1} parent=1 // pred_region
      %110 = dma.done [#allocation13], 16
    $region65: #{dalstm_forward.1} parent=1 // pred_fallthru
      _
    %111 = sfence
    %v113 = vld [vmem:[%s0] sm:$0xf]
    %v114 = vld [vmem:[%s0 + $0x4] sm:$0xf]
    %v115 = vld [vmem:[%s0 + $0x8] sm:$0xf]
    %v116 = vld [vmem:[%s0 + $0xc] sm:$0xf]
    %v117 = vld [vmem:[%s0 + $0x10] sm:$0xf]
    %v118 = vld [vmem:[%s0 + $0x14] sm:$0xf]
    %v119 = vld [vmem:[%s0 + $0x18] sm:$0xf]
    %v120 = vld [vmem:[%s0 + $0x1c] sm:$0xf]
    %v121 = vld [vmem:[%s1] sm:$0xff]
    %v122 = vld [vmem:[%s1 + $0x8] sm:$0xff]
    %v123 = vld [vmem:[%s1 + $0x10] sm:$0xff]
    %v124 = vld [vmem:[%s1 + $0x18] sm:$0xff]
    %v125 = vld [vmem:[%s2] sm:$0xf]
    %v127 = vperm.slane %v125, 0
    %v128 = vperm.slane %v125, 1
    %v129 = vperm.slane %v125, 2
    %v130 = vperm.slane %v125, 3
    %v143 = vunpack.c.l.b16 %v113
    %v144 = vunpack.c.l.b16 %v114
    %v145 = vunpack.c.l.b16 %v115
    %v146 = vunpack.c.l.b16 %v116
    %v147 = vunpack.c.l.b16 %v117
    %v148 = vunpack.c.l.b16 %v118
    %v149 = vunpack.c.l.b16 %v119
    %v150 = vunpack.c.l.b16 %v120
    %v151 = vpack.c.b16 %v144, %v143
    %v152 = vpack.c.b16 %v146, %v145
    %v153 = vpack.c.b16 %v148, %v147
    %v154 = vpack.c.b16 %v150, %v149
    %v159 = vunpack.c.l.b16 %v121
    %v160 = vunpack.c.h.b16 %v121
    %v161 = vunpack.c.l.b16 %v122
    %v162 = vunpack.c.h.b16 %v122
    %v163 = vunpack.c.l.b16 %v123
    %v164 = vunpack.c.h.b16 %v123
    %v165 = vunpack.c.l.b16 %v124
    %v166 = vunpack.c.h.b16 %v124
    %v167 = vpack.c.b16 %v163, %v159
    %v168 = vpack.c.b16 %v164, %v160
    %v169 = vpack.c.b16 %v165, %v161
    %v170 = vpack.c.b16 %v166, %v162
    %vm175 = vcmask 130048
    %v177 = vsel %vm175, %v151, 0
    %v180 = vsel %vm175, %v152, 0
    %v183 = vsel %vm175, %v153, 0
    %v186 = vsel %vm175, %v154, 0
    %188 = vmatpush.bf16.msra.mxu0 0
    %189 = vmatpush.bf16.msra.mxu0 0
    %190 = vmatpush.bf16.msra.mxu0 0
    %191 = vmatpush.bf16.msra.mxu0 0
    %192 = vmatpush.bf16.msra.mxu0 0
    %193 = vmatpush.bf16.msra.mxu0 0
    %194 = vmatpush.bf16.msra.mxu0 0
    %195 = vmatpush.bf16.msra.mxu0 %v167
    %196 = vmatmul.bf16.gmra.mxu0 %v177
    %v197 = vpop.f32.mrf.mxu0
    %v198 = vadd.f32 %v127, %v197
    %v199 = vpop.f32.mrf.mxu0
    %v200 = vadd.f32 %v127, %v199
    %201 = vmatmul.bf16.gmra.mxu0 %v180
    %v202 = vpop.f32.mrf.mxu0
    %v203 = vadd.f32 %v127, %v202
    %v204 = vpop.f32.mrf.mxu0
    %v205 = vadd.f32 %v127, %v204
    %206 = vmatmul.bf16.gmra.mxu0 %v183
    %v207 = vpop.f32.mrf.mxu0
    %v208 = vadd.f32 %v127, %v207
    %v209 = vpop.f32.mrf.mxu0
    %v210 = vadd.f32 %v127, %v209
    %211 = vmatmul.bf16.gmra.mxu0 %v186
    %v212 = vpop.f32.mrf.mxu0
    %v213 = vadd.f32 %v127, %v212
    %v214 = vpop.f32.mrf.mxu0
    %v215 = vadd.f32 %v127, %v214
    %216 = vdwg.mxu0
    %217 = vmatpush.bf16.msra.mxu0 0
    %218 = vmatpush.bf16.msra.mxu0 0
    %219 = vmatpush.bf16.msra.mxu0 0
    %220 = vmatpush.bf16.msra.mxu0 0
    %221 = vmatpush.bf16.msra.mxu0 0
    %222 = vmatpush.bf16.msra.mxu0 0
    %223 = vmatpush.bf16.msra.mxu0 0
    %224 = vmatpush.bf16.msra.mxu0 %v168
    %225 = vmatmul.bf16.gmra.mxu0 %v177
    %v226 = vpop.f32.mrf.mxu0
    %v227 = vadd.f32 %v128, %v226
    %v228 = vpop.f32.mrf.mxu0
    %v229 = vadd.f32 %v128, %v228
    %230 = vmatmul.bf16.gmra.mxu0 %v180
    %v231 = vpop.f32.mrf.mxu0
    %v232 = vadd.f32 %v128, %v231
    %v233 = vpop.f32.mrf.mxu0
    %v234 = vadd.f32 %v128, %v233
    %235 = vmatmul.bf16.gmra.mxu0 %v183
    %v236 = vpop.f32.mrf.mxu0
    %v237 = vadd.f32 %v128, %v236
    %v238 = vpop.f32.mrf.mxu0
    %v239 = vadd.f32 %v128, %v238
    %240 = vmatmul.bf16.gmra.mxu0 %v186
    %v241 = vpop.f32.mrf.mxu0
    %v242 = vadd.f32 %v128, %v241
    %v243 = vpop.f32.mrf.mxu0
    %v244 = vadd.f32 %v128, %v243
    %245 = vdwg.mxu0
    %246 = vmatpush.bf16.msra.mxu0 0
    %247 = vmatpush.bf16.msra.mxu0 0
    %248 = vmatpush.bf16.msra.mxu0 0
    %249 = vmatpush.bf16.msra.mxu0 0
    %250 = vmatpush.bf16.msra.mxu0 0
    %251 = vmatpush.bf16.msra.mxu0 0
    %252 = vmatpush.bf16.msra.mxu0 0
    %253 = vmatpush.bf16.msra.mxu0 %v169
    %254 = vmatmul.bf16.gmra.mxu0 %v177
    %v255 = vpop.f32.mrf.mxu0
    %v256 = vadd.f32 %v129, %v255
    %v257 = vpop.f32.mrf.mxu0
    %v258 = vadd.f32 %v129, %v257
    %259 = vmatmul.bf16.gmra.mxu0 %v180
    %v260 = vpop.f32.mrf.mxu0
    %v261 = vadd.f32 %v129, %v260
    %v262 = vpop.f32.mrf.mxu0
    %v263 = vadd.f32 %v129, %v262
    %264 = vmatmul.bf16.gmra.mxu0 %v183
    %v265 = vpop.f32.mrf.mxu0
    %v266 = vadd.f32 %v129, %v265
    %v267 = vpop.f32.mrf.mxu0
    %v268 = vadd.f32 %v129, %v267
    %269 = vmatmul.bf16.gmra.mxu0 %v186
    %v270 = vpop.f32.mrf.mxu0
    %v271 = vadd.f32 %v129, %v270
    %v272 = vpop.f32.mrf.mxu0
    %v273 = vadd.f32 %v129, %v272
    %274 = vdwg.mxu0
    %275 = vmatpush.bf16.msra.mxu0 0
    %276 = vmatpush.bf16.msra.mxu0 0
    %277 = vmatpush.bf16.msra.mxu0 0
    %278 = vmatpush.bf16.msra.mxu0 0
    %279 = vmatpush.bf16.msra.mxu0 0
    %280 = vmatpush.bf16.msra.mxu0 0
    %281 = vmatpush.bf16.msra.mxu0 0
    %282 = vmatpush.bf16.msra.mxu0 %v170
    %283 = vmatmul.bf16.gmra.mxu0 %v177
    %v284 = vpop.f32.mrf.mxu0
    %v285 = vadd.f32 %v130, %v284
    %v286 = vpop.f32.mrf.mxu0
    %v287 = vadd.f32 %v130, %v286
    %288 = vmatmul.bf16.gmra.mxu0 %v180
    %v289 = vpop.f32.mrf.mxu0
    %v290 = vadd.f32 %v130, %v289
    %v291 = vpop.f32.mrf.mxu0
    %v292 = vadd.f32 %v130, %v291
    %293 = vmatmul.bf16.gmra.mxu0 %v183
    %v294 = vpop.f32.mrf.mxu0
    %v295 = vadd.f32 %v130, %v294
    %v296 = vpop.f32.mrf.mxu0
    %v297 = vadd.f32 %v130, %v296
    %298 = vmatmul.bf16.gmra.mxu0 %v186
    %v299 = vpop.f32.mrf.mxu0
    %v300 = vadd.f32 %v130, %v299
    %v301 = vpop.f32.mrf.mxu0
    %v302 = vadd.f32 %v130, %v301
    %303 = vdwg.mxu0
    %304 = vst [vmem:[#allocation2] sm:$0xff] %v198
    %305 = vst [vmem:[#allocation2 + $0x8] sm:$0xff] %v227
    %306 = vst [vmem:[#allocation2 + $0x10] sm:$0xff] %v256
    %307 = vst [vmem:[#allocation2 + $0x18] sm:$0xff] %v285
    %308 = vst [vmem:[#allocation2 + $0x20] sm:$0xff] %v200
    %309 = vst [vmem:[#allocation2 + $0x28] sm:$0xff] %v229
    %310 = vst [vmem:[#allocation2 + $0x30] sm:$0xff] %v258
    %311 = vst [vmem:[#allocation2 + $0x38] sm:$0xff] %v287
    %312 = vst [vmem:[#allocation2 + $0x40] sm:$0xff] %v203
    %313 = vst [vmem:[#allocation2 + $0x48] sm:$0xff] %v232
    %314 = vst [vmem:[#allocation2 + $0x50] sm:$0xff] %v261
    %315 = vst [vmem:[#allocation2 + $0x58] sm:$0xff] %v290
    %316 = vst [vmem:[#allocation2 + $0x60] sm:$0xff] %v205
    %317 = vst [vmem:[#allocation2 + $0x68] sm:$0xff] %v234
    %318 = vst [vmem:[#allocation2 + $0x70] sm:$0xff] %v263
    %319 = vst [vmem:[#allocation2 + $0x78] sm:$0xff] %v292
    %320 = vst [vmem:[#allocation2 + $0x80] sm:$0xff] %v208
    %321 = vst [vmem:[#allocation2 + $0x88] sm:$0xff] %v237
    %322 = vst [vmem:[#allocation2 + $0x90] sm:$0xff] %v266
    %323 = vst [vmem:[#allocation2 + $0x98] sm:$0xff] %v295
    %324 = vst [vmem:[#allocation2 + $0xa0] sm:$0xff] %v210
    %325 = vst [vmem:[#allocation2 + $0xa8] sm:$0xff] %v239
    %326 = vst [vmem:[#allocation2 + $0xb0] sm:$0xff] %v268
    %327 = vst [vmem:[#allocation2 + $0xb8] sm:$0xff] %v297
    %328 = vst [vmem:[#allocation2 + $0xc0] sm:$0xff] %v213
    %329 = vst [vmem:[#allocation2 + $0xc8] sm:$0xff] %v242
    %330 = vst [vmem:[#allocation2 + $0xd0] sm:$0xff] %v271
    %331 = vst [vmem:[#allocation2 + $0xd8] sm:$0xff] %v300
    %332 = vst [vmem:[#allocation2 + $0xe0] sm:$0xff] %v215
    %333 = vst [vmem:[#allocation2 + $0xe8] sm:$0xff] %v244
    %334 = vst [vmem:[#allocation2 + $0xf0] sm:$0xff] %v273
    %335 = vst [vmem:[#allocation2 + $0xf8] sm:$0xff] %v302
    loop: start=0, step=1, limit=8
    $region66: #{dalstm_forward.1} parent=1 // loop_pre_header
      _
    $region67: #{dalstm_forward.1} parent=1 // loop_header
      %s337 = sphi 0, %s341
      %p338 = scmp.ge.s32.totalorder %s337, 8
      %v342 = vphi 0.0, %v665
      %v343 = vphi 0.0, %v663
    $region68: #{dalstm_forward.1} parent=1 // loop_header_branch
      %340 = sbr.rel (%p338) target = $region72
    $region69: #{dalstm_forward.1} parent=1 // loop_body
      %s344 = smul.u32 %s337, 8
      %s345 = sshra.s32 %s344, 3
      %s346 = sand.u32 %s344, 7
      %s347 = smul.u32 %s345, 4
      %s348 = smul.addr %s347, 8
      %s349 = scalar_lea.vmem [#allocation2], %s348
      %v350 = vld [vmem:[%s349] sm:$0xff]
      %v351 = vld [vmem:[%s349 + $0x8] sm:$0xff]
      %v352 = vld [vmem:[%s349 + $0x10] sm:$0xff]
      %v353 = vld [vmem:[%s349 + $0x18] sm:$0xff]
      %v354 = vpack.c.bf16 %v342, %v342
      %v355 = vld [vmem:[#allocation5] sm:$0xff]
      %v356 = vld [vmem:[#allocation5 + $0x8] sm:$0xff]
      %v357 = vld [vmem:[#allocation5 + $0x10] sm:$0xff]
      %v358 = vld [vmem:[#allocation5 + $0x18] sm:$0xff]
      %v359 = vld [vmem:[#allocation5 + $0x20] sm:$0xff]
      %v360 = vld [vmem:[#allocation5 + $0x28] sm:$0xff]
      %v361 = vld [vmem:[#allocation5 + $0x30] sm:$0xff]
      %v362 = vld [vmem:[#allocation5 + $0x38] sm:$0xff]
      %v363 = vld [vmem:[#allocation5 + $0x40] sm:$0xff]
      %v364 = vld [vmem:[#allocation5 + $0x48] sm:$0xff]
      %v365 = vld [vmem:[#allocation5 + $0x50] sm:$0xff]
      %v366 = vld [vmem:[#allocation5 + $0x58] sm:$0xff]
      %v367 = vld [vmem:[#allocation5 + $0x60] sm:$0xff]
      %v368 = vld [vmem:[#allocation5 + $0x68] sm:$0xff]
      %v369 = vld [vmem:[#allocation5 + $0x70] sm:$0xff]
      %v370 = vld [vmem:[#allocation5 + $0x78] sm:$0xff]
      %v371 = vld [vmem:[#allocation5 + $0x80] sm:$0xff]
      %v372 = vld [vmem:[#allocation5 + $0x88] sm:$0xff]
      %v373 = vld [vmem:[#allocation5 + $0x90] sm:$0xff]
      %v374 = vld [vmem:[#allocation5 + $0x98] sm:$0xff]
      %v375 = vld [vmem:[#allocation5 + $0xa0] sm:$0xff]
      %v376 = vld [vmem:[#allocation5 + $0xa8] sm:$0xff]
      %v377 = vld [vmem:[#allocation5 + $0xb0] sm:$0xff]
      %v378 = vld [vmem:[#allocation5 + $0xb8] sm:$0xff]
      %v379 = vld [vmem:[#allocation5 + $0xc0] sm:$0xff]
      %v380 = vld [vmem:[#allocation5 + $0xc8] sm:$0xff]
      %v381 = vld [vmem:[#allocation5 + $0xd0] sm:$0xff]
      %v382 = vld [vmem:[#allocation5 + $0xd8] sm:$0xff]
      %v383 = vld [vmem:[#allocation5 + $0xe0] sm:$0xff]
      %v384 = vld [vmem:[#allocation5 + $0xe8] sm:$0xff]
      %v385 = vld [vmem:[#allocation5 + $0xf0] sm:$0xff]
      %v386 = vld [vmem:[#allocation5 + $0xf8] sm:$0xff]
      %v419 = vunpack.c.l.b16 %v355
      %v420 = vunpack.c.h.b16 %v355
      %v421 = vunpack.c.l.b16 %v356
      %v422 = vunpack.c.h.b16 %v356
      %v423 = vunpack.c.l.b16 %v357
      %v424 = vunpack.c.h.b16 %v357
      %v425 = vunpack.c.l.b16 %v358
      %v426 = vunpack.c.h.b16 %v358
      %v427 = vunpack.c.l.b16 %v359
      %v428 = vunpack.c.h.b16 %v359
      %v429 = vunpack.c.l.b16 %v360
      %v430 = vunpack.c.h.b16 %v360
      %v431 = vunpack.c.l.b16 %v361
      %v432 = vunpack.c.h.b16 %v361
      %v433 = vunpack.c.l.b16 %v362
      %v434 = vunpack.c.h.b16 %v362
      %v435 = vunpack.c.l.b16 %v363
      %v436 = vunpack.c.h.b16 %v363
      %v437 = vunpack.c.l.b16 %v364
      %v438 = vunpack.c.h.b16 %v364
      %v439 = vunpack.c.l.b16 %v365
      %v440 = vunpack.c.h.b16 %v365
      %v441 = vunpack.c.l.b16 %v366
      %v442 = vunpack.c.h.b16 %v366
      %v443 = vunpack.c.l.b16 %v367
      %v444 = vunpack.c.h.b16 %v367
      %v445 = vunpack.c.l.b16 %v368
      %v446 = vunpack.c.h.b16 %v368
      %v447 = vunpack.c.l.b16 %v369
      %v448 = vunpack.c.h.b16 %v369
      %v449 = vunpack.c.l.b16 %v370
      %v450 = vunpack.c.h.b16 %v370
      %v451 = vunpack.c.l.b16 %v371
      %v452 = vunpack.c.h.b16 %v371
      %v453 = vunpack.c.l.b16 %v372
      %v454 = vunpack.c.h.b16 %v372
      %v455 = vunpack.c.l.b16 %v373
      %v456 = vunpack.c.h.b16 %v373
      %v457 = vunpack.c.l.b16 %v374
      %v458 = vunpack.c.h.b16 %v374
      %v459 = vunpack.c.l.b16 %v375
      %v460 = vunpack.c.h.b16 %v375
      %v461 = vunpack.c.l.b16 %v376
      %v462 = vunpack.c.h.b16 %v376
      %v463 = vunpack.c.l.b16 %v377
      %v464 = vunpack.c.h.b16 %v377
      %v465 = vunpack.c.l.b16 %v378
      %v466 = vunpack.c.h.b16 %v378
      %v467 = vunpack.c.l.b16 %v379
      %v468 = vunpack.c.h.b16 %v379
      %v469 = vunpack.c.l.b16 %v380
      %v470 = vunpack.c.h.b16 %v380
      %v471 = vunpack.c.l.b16 %v381
      %v472 = vunpack.c.h.b16 %v381
      %v473 = vunpack.c.l.b16 %v382
      %v474 = vunpack.c.h.b16 %v382
      %v475 = vunpack.c.l.b16 %v383
      %v476 = vunpack.c.h.b16 %v383
      %v477 = vunpack.c.l.b16 %v384
      %v478 = vunpack.c.h.b16 %v384
      %v479 = vunpack.c.l.b16 %v385
      %v480 = vunpack.c.h.b16 %v385
      %v481 = vunpack.c.l.b16 %v386
      %v482 = vunpack.c.h.b16 %v386
      %v483 = vpack.c.b16 %v423, %v419
      %v484 = vpack.c.b16 %v424, %v420
      %v485 = vpack.c.b16 %v425, %v421
      %v486 = vpack.c.b16 %v426, %v422
      %v487 = vpack.c.b16 %v431, %v427
      %v488 = vpack.c.b16 %v432, %v428
      %v489 = vpack.c.b16 %v433, %v429
      %v490 = vpack.c.b16 %v434, %v430
      %v491 = vpack.c.b16 %v439, %v435
      %v492 = vpack.c.b16 %v440, %v436
      %v493 = vpack.c.b16 %v441, %v437
      %v494 = vpack.c.b16 %v442, %v438
      %v495 = vpack.c.b16 %v447, %v443
      %v496 = vpack.c.b16 %v448, %v444
      %v497 = vpack.c.b16 %v449, %v445
      %v498 = vpack.c.b16 %v450, %v446
      %v499 = vpack.c.b16 %v455, %v451
      %v500 = vpack.c.b16 %v456, %v452
      %v501 = vpack.c.b16 %v457, %v453
      %v502 = vpack.c.b16 %v458, %v454
      %v503 = vpack.c.b16 %v463, %v459
      %v504 = vpack.c.b16 %v464, %v460
      %v505 = vpack.c.b16 %v465, %v461
      %v506 = vpack.c.b16 %v466, %v462
      %v507 = vpack.c.b16 %v471, %v467
      %v508 = vpack.c.b16 %v472, %v468
      %v509 = vpack.c.b16 %v473, %v469
      %v510 = vpack.c.b16 %v474, %v470
      %v511 = vpack.c.b16 %v479, %v475
      %v512 = vpack.c.b16 %v480, %v476
      %v513 = vpack.c.b16 %v481, %v477
      %v514 = vpack.c.b16 %v482, %v478
      %547 = vmatpush.bf16.msra.mxu0 %v511
      %548 = vmatpush.bf16.msra.mxu0 %v507
      %549 = vmatpush.bf16.msra.mxu0 %v503
      %550 = vmatpush.bf16.msra.mxu0 %v499
      %551 = vmatpush.bf16.msra.mxu0 %v495
      %552 = vmatpush.bf16.msra.mxu0 %v491
      %553 = vmatpush.bf16.msra.mxu0 %v487
      %554 = vmatpush.bf16.msra.mxu0 %v483
      %555 = vmatmul.bf16.gmra.mxu0 %v354
      %v556 = vpop.f32.mrf.mxu0
      %v557 = vadd.f32 0.0, %v556
      %v558 = vpop.f32.mrf.mxu0
      %559 = vdwg.mxu0
      %560 = vmatpush.bf16.msra.mxu0 %v512
      %561 = vmatpush.bf16.msra.mxu0 %v508
      %562 = vmatpush.bf16.msra.mxu0 %v504
      %563 = vmatpush.bf16.msra.mxu0 %v500
      %564 = vmatpush.bf16.msra.mxu0 %v496
      %565 = vmatpush.bf16.msra.mxu0 %v492
      %566 = vmatpush.bf16.msra.mxu0 %v488
      %567 = vmatpush.bf16.msra.mxu0 %v484
      %568 = vmatmul.bf16.gmra.mxu0 %v354
      %v569 = vpop.f32.mrf.mxu0
      %v570 = vadd.f32 0.0, %v569
      %v571 = vpop.f32.mrf.mxu0
      %572 = vdwg.mxu0
      %573 = vmatpush.bf16.msra.mxu0 %v513
      %574 = vmatpush.bf16.msra.mxu0 %v509
      %575 = vmatpush.bf16.msra.mxu0 %v505
      %576 = vmatpush.bf16.msra.mxu0 %v501
      %577 = vmatpush.bf16.msra.mxu0 %v497
      %578 = vmatpush.bf16.msra.mxu0 %v493
      %579 = vmatpush.bf16.msra.mxu0 %v489
      %580 = vmatpush.bf16.msra.mxu0 %v485
      %581 = vmatmul.bf16.gmra.mxu0 %v354
      %v582 = vpop.f32.mrf.mxu0
      %v583 = vadd.f32 0.0, %v582
      %v584 = vpop.f32.mrf.mxu0
      %585 = vdwg.mxu0
      %586 = vmatpush.bf16.msra.mxu0 %v514
      %587 = vmatpush.bf16.msra.mxu0 %v510
      %588 = vmatpush.bf16.msra.mxu0 %v506
      %589 = vmatpush.bf16.msra.mxu0 %v502
      %590 = vmatpush.bf16.msra.mxu0 %v498
      %591 = vmatpush.bf16.msra.mxu0 %v494
      %592 = vmatpush.bf16.msra.mxu0 %v490
      %593 = vmatpush.bf16.msra.mxu0 %v486
      %594 = vmatmul.bf16.gmra.mxu0 %v354
      %v595 = vpop.f32.mrf.mxu0
      %v596 = vadd.f32 0.0, %v595
      %v597 = vpop.f32.mrf.mxu0
      %598 = vdwg.mxu0
      %v599 = vadd.f32 %v350, %v557
      %v600 = vadd.f32 %v351, %v570
      %v601 = vadd.f32 %v352, %v583
      %v602 = vadd.f32 %v353, %v596
      %v603 = vxor.u32 %v599, 2147483648
      %v604 = vmul.f32 %v603, 1.442695
      %v605 = vpow.pop %v604
      %v606 = vadd.f32 %v605, 1.0
      %v607 = vrcp.pop %v606
      %v608 = vmul.f32 %v606, %v607
      %v609 = vsub.f32 1.0, %v608
      %v610 = vmul.f32 %v607, %v609
      %v611 = vadd.f32 %v607, %v610
      %vm612 = vweird.f32 %v606
      %vm613 = vweird.f32 %v607
      %vm614 = vmor %vm612, %vm613
      %v615 = vsel %vm614, %v607, %v611
      %v616 = vand.u32 2147483647, %v606
      %vm617 = vcmp.eq.f32.partialorder %v616, 8.507059e+37
      %v618 = vand.u32 %v606, 2147483648
      %v619 = vor.u32 1.1754944e-38, %v618
      %v620 = vsel %vm617, %v619, %v615
      %v621 = vmul.f32 1.0, %v620
      %v622 = vxor.u32 %v600, 2147483648
      %v623 = vmul.f32 %v622, 1.442695
      %v624 = vpow.pop %v623
      %v625 = vadd.f32 %v624, 1.0
      %v626 = vrcp.pop %v625
      %v627 = vmul.f32 %v625, %v626
      %v628 = vsub.f32 1.0, %v627
      %v629 = vmul.f32 %v626, %v628
      %v630 = vadd.f32 %v626, %v629
      %vm631 = vweird.f32 %v625
      %vm632 = vweird.f32 %v626
      %vm633 = vmor %vm631, %vm632
      %v634 = vsel %vm633, %v626, %v630
      %v635 = vand.u32 2147483647, %v625
      %vm636 = vcmp.eq.f32.partialorder %v635, 8.507059e+37
      %v637 = vand.u32 %v625, 2147483648
      %v638 = vor.u32 1.1754944e-38, %v637
      %v639 = vsel %vm636, %v638, %v634
      %v640 = vmul.f32 1.0, %v639
      %v641 = vtanh.pop %v601
      %v642 = vxor.u32 %v602, 2147483648
      %v643 = vmul.f32 %v642, 1.442695
      %v644 = vpow.pop %v643
      %v645 = vadd.f32 %v644, 1.0
      %v646 = vrcp.pop %v645
      %v647 = vmul.f32 %v645, %v646
      %v648 = vsub.f32 1.0, %v647
      %v649 = vmul.f32 %v646, %v648
      %v650 = vadd.f32 %v646, %v649
      %vm651 = vweird.f32 %v645
      %vm652 = vweird.f32 %v646
      %vm653 = vmor %vm651, %vm652
      %v654 = vsel %vm653, %v646, %v650
      %v655 = vand.u32 2147483647, %v645
      %vm656 = vcmp.eq.f32.partialorder %v655, 8.507059e+37
      %v657 = vand.u32 %v645, 2147483648
      %v658 = vor.u32 1.1754944e-38, %v657
      %v659 = vsel %vm656, %v658, %v654
      %v660 = vmul.f32 1.0, %v659
      %v661 = vmul.f32 %v640, %v343
      %v662 = vmul.f32 %v621, %v641
      %v663 = vadd.f32 %v661, %v662
      %v664 = vtanh.pop %v663
      %v665 = vmul.f32 %v660, %v664
      %s666 = sld [smem:[#allocation11 + %s337]]
      %v667 = vstv %s666
      %v668 = vmul.f32 %v665, %v667
      %s669 = sld [smem:[#allocation12 + %s337]]
      %v670 = vstv %s669
      %v671 = vadd.f32 %v668, %v670
      %s672 = scalar_lea.vmem [#allocation3], %s344
      %673 = vst [vmem:[%s672] sm:$0xff] %v671
    $region70: #{dalstm_forward.1} parent=1 // loop_footer
      %s341 = sadd.s32 1, %s337
    $region71: #{dalstm_forward.1} parent=1 // loop_footer_branch
      %336 = sbr.rel target = $region67
    $region72: #{dalstm_forward.1} parent=1 // loop_exit
      _
    %v674 = vld [vmem:[#allocation3] sm:$0xff]
    %v675 = vld [vmem:[#allocation3 + $0x8] sm:$0xff]
    %v676 = vld [vmem:[#allocation3 + $0x10] sm:$0xff]
    %v677 = vld [vmem:[#allocation3 + $0x18] sm:$0xff]
    %v678 = vld [vmem:[#allocation3 + $0x20] sm:$0xff]
    %v679 = vld [vmem:[#allocation3 + $0x28] sm:$0xff]
    %v680 = vld [vmem:[#allocation3 + $0x30] sm:$0xff]
    %v681 = vld [vmem:[#allocation3 + $0x38] sm:$0xff]
    %v682 = vpack.c.bf16 %v675, %v674
    %v683 = vpack.c.bf16 %v677, %v676
    %v684 = vpack.c.bf16 %v679, %v678
    %v685 = vpack.c.bf16 %v681, %v680
    %v686 = vld [vmem:[#allocation8] sm:$0xff]
    %v687 = vld [vmem:[#allocation8 + $0x8] sm:$0xff]
    %v688 = vld [vmem:[#allocation8 + $0x10] sm:$0xff]
    %v689 = vld [vmem:[#allocation8 + $0x18] sm:$0xff]
    %v690 = vld [vmem:[#allocation8 + $0x20] sm:$0xff]
    %v691 = vld [vmem:[#allocation8 + $0x28] sm:$0xff]
    %v692 = vld [vmem:[#allocation8 + $0x30] sm:$0xff]
    %v693 = vld [vmem:[#allocation8 + $0x38] sm:$0xff]
    %v694 = vld [vmem:[#allocation8 + $0x40] sm:$0xff]
    %v695 = vld [vmem:[#allocation8 + $0x48] sm:$0xff]
    %v696 = vld [vmem:[#allocation8 + $0x50] sm:$0xff]
    %v697 = vld [vmem:[#allocation8 + $0x58] sm:$0xff]
    %v698 = vld [vmem:[#allocation8 + $0x60] sm:$0xff]
    %v699 = vld [vmem:[#allocation8 + $0x68] sm:$0xff]
    %v700 = vld [vmem:[#allocation8 + $0x70] sm:$0xff]
    %v701 = vld [vmem:[#allocation8 + $0x78] sm:$0xff]
    %v702 = vld [vmem:[#allocation8 + $0x80] sm:$0xff]
    %v703 = vld [vmem:[#allocation8 + $0x88] sm:$0xff]
    %v704 = vld [vmem:[#allocation8 + $0x90] sm:$0xff]
    %v705 = vld [vmem:[#allocation8 + $0x98] sm:$0xff]
    %v706 = vld [vmem:[#allocation8 + $0xa0] sm:$0xff]
    %v707 = vld [vmem:[#allocation8 + $0xa8] sm:$0xff]
    %v708 = vld [vmem:[#allocation8 + $0xb0] sm:$0xff]
    %v709 = vld [vmem:[#allocation8 + $0xb8] sm:$0xff]
    %v710 = vld [vmem:[#allocation8 + $0xc0] sm:$0xff]
    %v711 = vld [vmem:[#allocation8 + $0xc8] sm:$0xff]
    %v712 = vld [vmem:[#allocation8 + $0xd0] sm:$0xff]
    %v713 = vld [vmem:[#allocation8 + $0xd8] sm:$0xff]
    %v714 = vld [vmem:[#allocation8 + $0xe0] sm:$0xff]
    %v715 = vld [vmem:[#allocation8 + $0xe8] sm:$0xff]
    %v716 = vld [vmem:[#allocation8 + $0xf0] sm:$0xff]
    %v717 = vld [vmem:[#allocation8 + $0xf8] sm:$0xff]
    %v718 = vld [vmem:[%s5] sm:$0xf]
    %v720 = vperm.slane %v718, 0
    %v721 = vperm.slane %v718, 1
    %v722 = vperm.slane %v718, 2
    %v723 = vperm.slane %v718, 3
    %v760 = vunpack.c.l.b16 %v686
    %v761 = vunpack.c.h.b16 %v686
    %v762 = vunpack.c.l.b16 %v687
    %v763 = vunpack.c.h.b16 %v687
    %v764 = vunpack.c.l.b16 %v688
    %v765 = vunpack.c.h.b16 %v688
    %v766 = vunpack.c.l.b16 %v689
    %v767 = vunpack.c.h.b16 %v689
    %v768 = vunpack.c.l.b16 %v690
    %v769 = vunpack.c.h.b16 %v690
    %v770 = vunpack.c.l.b16 %v691
    %v771 = vunpack.c.h.b16 %v691
    %v772 = vunpack.c.l.b16 %v692
    %v773 = vunpack.c.h.b16 %v692
    %v774 = vunpack.c.l.b16 %v693
    %v775 = vunpack.c.h.b16 %v693
    %v776 = vunpack.c.l.b16 %v694
    %v777 = vunpack.c.h.b16 %v694
    %v778 = vunpack.c.l.b16 %v695
    %v779 = vunpack.c.h.b16 %v695
    %v780 = vunpack.c.l.b16 %v696
    %v781 = vunpack.c.h.b16 %v696
    %v782 = vunpack.c.l.b16 %v697
    %v783 = vunpack.c.h.b16 %v697
    %v784 = vunpack.c.l.b16 %v698
    %v785 = vunpack.c.h.b16 %v698
    %v786 = vunpack.c.l.b16 %v699
    %v787 = vunpack.c.h.b16 %v699
    %v788 = vunpack.c.l.b16 %v700
    %v789 = vunpack.c.h.b16 %v700
    %v790 = vunpack.c.l.b16 %v701
    %v791 = vunpack.c.h.b16 %v701
    %v792 = vunpack.c.l.b16 %v702
    %v793 = vunpack.c.h.b16 %v702
    %v794 = vunpack.c.l.b16 %v703
    %v795 = vunpack.c.h.b16 %v703
    %v796 = vunpack.c.l.b16 %v704
    %v797 = vunpack.c.h.b16 %v704
    %v798 = vunpack.c.l.b16 %v705
    %v799 = vunpack.c.h.b16 %v705
    %v800 = vunpack.c.l.b16 %v706
    %v801 = vunpack.c.h.b16 %v706
    %v802 = vunpack.c.l.b16 %v707
    %v803 = vunpack.c.h.b16 %v707
    %v804 = vunpack.c.l.b16 %v708
    %v805 = vunpack.c.h.b16 %v708
    %v806 = vunpack.c.l.b16 %v709
    %v807 = vunpack.c.h.b16 %v709
    %v808 = vunpack.c.l.b16 %v710
    %v809 = vunpack.c.h.b16 %v710
    %v810 = vunpack.c.l.b16 %v711
    %v811 = vunpack.c.h.b16 %v711
    %v812 = vunpack.c.l.b16 %v712
    %v813 = vunpack.c.h.b16 %v712
    %v814 = vunpack.c.l.b16 %v713
    %v815 = vunpack.c.h.b16 %v713
    %v816 = vunpack.c.l.b16 %v714
    %v817 = vunpack.c.h.b16 %v714
    %v818 = vunpack.c.l.b16 %v715
    %v819 = vunpack.c.h.b16 %v715
    %v820 = vunpack.c.l.b16 %v716
    %v821 = vunpack.c.h.b16 %v716
    %v822 = vunpack.c.l.b16 %v717
    %v823 = vunpack.c.h.b16 %v717
    %v824 = vpack.c.b16 %v764, %v760
    %v825 = vpack.c.b16 %v765, %v761
    %v826 = vpack.c.b16 %v766, %v762
    %v827 = vpack.c.b16 %v767, %v763
    %v828 = vpack.c.b16 %v772, %v768
    %v829 = vpack.c.b16 %v773, %v769
    %v830 = vpack.c.b16 %v774, %v770
    %v831 = vpack.c.b16 %v775, %v771
    %v832 = vpack.c.b16 %v780, %v776
    %v833 = vpack.c.b16 %v781, %v777
    %v834 = vpack.c.b16 %v782, %v778
    %v835 = vpack.c.b16 %v783, %v779
    %v836 = vpack.c.b16 %v788, %v784
    %v837 = vpack.c.b16 %v789, %v785
    %v838 = vpack.c.b16 %v790, %v786
    %v839 = vpack.c.b16 %v791, %v787
    %v840 = vpack.c.b16 %v796, %v792
    %v841 = vpack.c.b16 %v797, %v793
    %v842 = vpack.c.b16 %v798, %v794
    %v843 = vpack.c.b16 %v799, %v795
    %v844 = vpack.c.b16 %v804, %v800
    %v845 = vpack.c.b16 %v805, %v801
    %v846 = vpack.c.b16 %v806, %v802
    %v847 = vpack.c.b16 %v807, %v803
    %v848 = vpack.c.b16 %v812, %v808
    %v849 = vpack.c.b16 %v813, %v809
    %v850 = vpack.c.b16 %v814, %v810
    %v851 = vpack.c.b16 %v815, %v811
    %v852 = vpack.c.b16 %v820, %v816
    %v853 = vpack.c.b16 %v821, %v817
    %v854 = vpack.c.b16 %v822, %v818
    %v855 = vpack.c.b16 %v823, %v819
    %888 = vmatpush.bf16.msra.mxu0 %v852
    %889 = vmatpush.bf16.msra.mxu0 %v848
    %890 = vmatpush.bf16.msra.mxu0 %v844
    %891 = vmatpush.bf16.msra.mxu0 %v840
    %892 = vmatpush.bf16.msra.mxu0 %v836
    %893 = vmatpush.bf16.msra.mxu0 %v832
    %894 = vmatpush.bf16.msra.mxu0 %v828
    %895 = vmatpush.bf16.msra.mxu0 %v824
    %896 = vmatmul.bf16.gmra.mxu0 %v682
    %v897 = vpop.f32.mrf.mxu0
    %v898 = vadd.f32 %v720, %v897
    %v899 = vpop.f32.mrf.mxu0
    %v900 = vadd.f32 %v720, %v899
    %901 = vmatmul.bf16.gmra.mxu0 %v683
    %v902 = vpop.f32.mrf.mxu0
    %v903 = vadd.f32 %v720, %v902
    %v904 = vpop.f32.mrf.mxu0
    %v905 = vadd.f32 %v720, %v904
    %906 = vmatmul.bf16.gmra.mxu0 %v684
    %v907 = vpop.f32.mrf.mxu0
    %v908 = vadd.f32 %v720, %v907
    %v909 = vpop.f32.mrf.mxu0
    %v910 = vadd.f32 %v720, %v909
    %911 = vmatmul.bf16.gmra.mxu0 %v685
    %v912 = vpop.f32.mrf.mxu0
    %v913 = vadd.f32 %v720, %v912
    %v914 = vpop.f32.mrf.mxu0
    %v915 = vadd.f32 %v720, %v914
    %916 = vdwg.mxu0
    %917 = vmatpush.bf16.msra.mxu0 %v853
    %918 = vmatpush.bf16.msra.mxu0 %v849
    %919 = vmatpush.bf16.msra.mxu0 %v845
    %920 = vmatpush.bf16.msra.mxu0 %v841
    %921 = vmatpush.bf16.msra.mxu0 %v837
    %922 = vmatpush.bf16.msra.mxu0 %v833
    %923 = vmatpush.bf16.msra.mxu0 %v829
    %924 = vmatpush.bf16.msra.mxu0 %v825
    %925 = vmatmul.bf16.gmra.mxu0 %v682
    %v926 = vpop.f32.mrf.mxu0
    %v927 = vadd.f32 %v721, %v926
    %v928 = vpop.f32.mrf.mxu0
    %v929 = vadd.f32 %v721, %v928
    %930 = vmatmul.bf16.gmra.mxu0 %v683
    %v931 = vpop.f32.mrf.mxu0
    %v932 = vadd.f32 %v721, %v931
    %v933 = vpop.f32.mrf.mxu0
    %v934 = vadd.f32 %v721, %v933
    %935 = vmatmul.bf16.gmra.mxu0 %v684
    %v936 = vpop.f32.mrf.mxu0
    %v937 = vadd.f32 %v721, %v936
    %v938 = vpop.f32.mrf.mxu0
    %v939 = vadd.f32 %v721, %v938
    %940 = vmatmul.bf16.gmra.mxu0 %v685
    %v941 = vpop.f32.mrf.mxu0
    %v942 = vadd.f32 %v721, %v941
    %v943 = vpop.f32.mrf.mxu0
    %v944 = vadd.f32 %v721, %v943
    %945 = vdwg.mxu0
    %946 = vmatpush.bf16.msra.mxu0 %v854
    %947 = vmatpush.bf16.msra.mxu0 %v850
    %948 = vmatpush.bf16.msra.mxu0 %v846
    %949 = vmatpush.bf16.msra.mxu0 %v842
    %950 = vmatpush.bf16.msra.mxu0 %v838
    %951 = vmatpush.bf16.msra.mxu0 %v834
    %952 = vmatpush.bf16.msra.mxu0 %v830
    %953 = vmatpush.bf16.msra.mxu0 %v826
    %954 = vmatmul.bf16.gmra.mxu0 %v682
    %v955 = vpop.f32.mrf.mxu0
    %v956 = vadd.f32 %v722, %v955
    %v957 = vpop.f32.mrf.mxu0
    %v958 = vadd.f32 %v722, %v957
    %959 = vmatmul.bf16.gmra.mxu0 %v683
    %v960 = vpop.f32.mrf.mxu0
    %v961 = vadd.f32 %v722, %v960
    %v962 = vpop.f32.mrf.mxu0
    %v963 = vadd.f32 %v722, %v962
    %964 = vmatmul.bf16.gmra.mxu0 %v684
    %v965 = vpop.f32.mrf.mxu0
    %v966 = vadd.f32 %v722, %v965
    %v967 = vpop.f32.mrf.mxu0
    %v968 = vadd.f32 %v722, %v967
    %969 = vmatmul.bf16.gmra.mxu0 %v685
    %v970 = vpop.f32.mrf.mxu0
    %v971 = vadd.f32 %v722, %v970
    %v972 = vpop.f32.mrf.mxu0
    %v973 = vadd.f32 %v722, %v972
    %974 = vdwg.mxu0
    %975 = vmatpush.bf16.msra.mxu0 %v855
    %976 = vmatpush.bf16.msra.mxu0 %v851
    %977 = vmatpush.bf16.msra.mxu0 %v847
    %978 = vmatpush.bf16.msra.mxu0 %v843
    %979 = vmatpush.bf16.msra.mxu0 %v839
    %980 = vmatpush.bf16.msra.mxu0 %v835
    %981 = vmatpush.bf16.msra.mxu0 %v831
    %982 = vmatpush.bf16.msra.mxu0 %v827
    %983 = vmatmul.bf16.gmra.mxu0 %v682
    %v984 = vpop.f32.mrf.mxu0
    %v985 = vadd.f32 %v723, %v984
    %v986 = vpop.f32.mrf.mxu0
    %v987 = vadd.f32 %v723, %v986
    %988 = vmatmul.bf16.gmra.mxu0 %v683
    %v989 = vpop.f32.mrf.mxu0
    %v990 = vadd.f32 %v723, %v989
    %v991 = vpop.f32.mrf.mxu0
    %v992 = vadd.f32 %v723, %v991
    %993 = vmatmul.bf16.gmra.mxu0 %v684
    %v994 = vpop.f32.mrf.mxu0
    %v995 = vadd.f32 %v723, %v994
    %v996 = vpop.f32.mrf.mxu0
    %v997 = vadd.f32 %v723, %v996
    %998 = vmatmul.bf16.gmra.mxu0 %v685
    %v999 = vpop.f32.mrf.mxu0
    %v1000 = vadd.f32 %v723, %v999
    %v1001 = vpop.f32.mrf.mxu0
    %v1002 = vadd.f32 %v723, %v1001
    %1003 = vdwg.mxu0
    %1004 = vst [vmem:[#allocation2] sm:$0xff] %v898
    %1005 = vst [vmem:[#allocation2 + $0x8] sm:$0xff] %v927
    %1006 = vst [vmem:[#allocation2 + $0x10] sm:$0xff] %v956
    %1007 = vst [vmem:[#allocation2 + $0x18] sm:$0xff] %v985
    %1008 = vst [vmem:[#allocation2 + $0x20] sm:$0xff] %v900
    %1009 = vst [vmem:[#allocation2 + $0x28] sm:$0xff] %v929
    %1010 = vst [vmem:[#allocation2 + $0x30] sm:$0xff] %v958
    %1011 = vst [vmem:[#allocation2 + $0x38] sm:$0xff] %v987
    %1012 = vst [vmem:[#allocation2 + $0x40] sm:$0xff] %v903
    %1013 = vst [vmem:[#allocation2 + $0x48] sm:$0xff] %v932
    %1014 = vst [vmem:[#allocation2 + $0x50] sm:$0xff] %v961
    %1015 = vst [vmem:[#allocation2 + $0x58] sm:$0xff] %v990
    %1016 = vst [vmem:[#allocation2 + $0x60] sm:$0xff] %v905
    %1017 = vst [vmem:[#allocation2 + $0x68] sm:$0xff] %v934
    %1018 = vst [vmem:[#allocation2 + $0x70] sm:$0xff] %v963
    %1019 = vst [vmem:[#allocation2 + $0x78] sm:$0xff] %v992
    %1020 = vst [vmem:[#allocation2 + $0x80] sm:$0xff] %v908
    %1021 = vst [vmem:[#allocation2 + $0x88] sm:$0xff] %v937
    %1022 = vst [vmem:[#allocation2 + $0x90] sm:$0xff] %v966
    %1023 = vst [vmem:[#allocation2 + $0x98] sm:$0xff] %v995
    %1024 = vst [vmem:[#allocation2 + $0xa0] sm:$0xff] %v910
    %1025 = vst [vmem:[#allocation2 + $0xa8] sm:$0xff] %v939
    %1026 = vst [vmem:[#allocation2 + $0xb0] sm:$0xff] %v968
    %1027 = vst [vmem:[#allocation2 + $0xb8] sm:$0xff] %v997
    %1028 = vst [vmem:[#allocation2 + $0xc0] sm:$0xff] %v913
    %1029 = vst [vmem:[#allocation2 + $0xc8] sm:$0xff] %v942
    %1030 = vst [vmem:[#allocation2 + $0xd0] sm:$0xff] %v971
    %1031 = vst [vmem:[#allocation2 + $0xd8] sm:$0xff] %v1000
    %1032 = vst [vmem:[#allocation2 + $0xe0] sm:$0xff] %v915
    %1033 = vst [vmem:[#allocation2 + $0xe8] sm:$0xff] %v944
    %1034 = vst [vmem:[#allocation2 + $0xf0] sm:$0xff] %v973
    %1035 = vst [vmem:[#allocation2 + $0xf8] sm:$0xff] %v1002
    loop: start=0, step=1, limit=8
    $region73: #{dalstm_forward.1} parent=1 // loop_pre_header
      _
    $region74: #{dalstm_forward.1} parent=1 // loop_header
      %s1037 = sphi 0, %s1041
      %p1038 = scmp.ge.s32.totalorder %s1037, 8
      %v1042 = vphi %v342, %v1365
      %v1043 = vphi %v343, %v1363
    $region75: #{dalstm_forward.1} parent=1 // loop_header_branch
      %1040 = sbr.rel (%p1038) target = $region79
    $region76: #{dalstm_forward.1} parent=1 // loop_body
      %s1044 = smul.u32 %s1037, 8
      %s1045 = sshra.s32 %s1044, 3
      %s1046 = sand.u32 %s1044, 7
      %s1047 = smul.u32 %s1045, 4
      %s1048 = smul.addr %s1047, 8
      %s1049 = scalar_lea.vmem [#allocation2], %s1048
      %v1050 = vld [vmem:[%s1049] sm:$0xff]
      %v1051 = vld [vmem:[%s1049 + $0x8] sm:$0xff]
      %v1052 = vld [vmem:[%s1049 + $0x10] sm:$0xff]
      %v1053 = vld [vmem:[%s1049 + $0x18] sm:$0xff]
      %v1054 = vpack.c.bf16 %v1042, %v1042
      %v1055 = vld [vmem:[#allocation10] sm:$0xff]
      %v1056 = vld [vmem:[#allocation10 + $0x8] sm:$0xff]
      %v1057 = vld [vmem:[#allocation10 + $0x10] sm:$0xff]
      %v1058 = vld [vmem:[#allocation10 + $0x18] sm:$0xff]
      %v1059 = vld [vmem:[#allocation10 + $0x20] sm:$0xff]
      %v1060 = vld [vmem:[#allocation10 + $0x28] sm:$0xff]
      %v1061 = vld [vmem:[#allocation10 + $0x30] sm:$0xff]
      %v1062 = vld [vmem:[#allocation10 + $0x38] sm:$0xff]
      %v1063 = vld [vmem:[#allocation10 + $0x40] sm:$0xff]
      %v1064 = vld [vmem:[#allocation10 + $0x48] sm:$0xff]
      %v1065 = vld [vmem:[#allocation10 + $0x50] sm:$0xff]
      %v1066 = vld [vmem:[#allocation10 + $0x58] sm:$0xff]
      %v1067 = vld [vmem:[#allocation10 + $0x60] sm:$0xff]
      %v1068 = vld [vmem:[#allocation10 + $0x68] sm:$0xff]
      %v1069 = vld [vmem:[#allocation10 + $0x70] sm:$0xff]
      %v1070 = vld [vmem:[#allocation10 + $0x78] sm:$0xff]
      %v1071 = vld [vmem:[#allocation10 + $0x80] sm:$0xff]
      %v1072 = vld [vmem:[#allocation10 + $0x88] sm:$0xff]
      %v1073 = vld [vmem:[#allocation10 + $0x90] sm:$0xff]
      %v1074 = vld [vmem:[#allocation10 + $0x98] sm:$0xff]
      %v1075 = vld [vmem:[#allocation10 + $0xa0] sm:$0xff]
      %v1076 = vld [vmem:[#allocation10 + $0xa8] sm:$0xff]
      %v1077 = vld [vmem:[#allocation10 + $0xb0] sm:$0xff]
      %v1078 = vld [vmem:[#allocation10 + $0xb8] sm:$0xff]
      %v1079 = vld [vmem:[#allocation10 + $0xc0] sm:$0xff]
      %v1080 = vld [vmem:[#allocation10 + $0xc8] sm:$0xff]
      %v1081 = vld [vmem:[#allocation10 + $0xd0] sm:$0xff]
      %v1082 = vld [vmem:[#allocation10 + $0xd8] sm:$0xff]
      %v1083 = vld [vmem:[#allocation10 + $0xe0] sm:$0xff]
      %v1084 = vld [vmem:[#allocation10 + $0xe8] sm:$0xff]
      %v1085 = vld [vmem:[#allocation10 + $0xf0] sm:$0xff]
      %v1086 = vld [vmem:[#allocation10 + $0xf8] sm:$0xff]
      %v1119 = vunpack.c.l.b16 %v1055
      %v1120 = vunpack.c.h.b16 %v1055
      %v1121 = vunpack.c.l.b16 %v1056
      %v1122 = vunpack.c.h.b16 %v1056
      %v1123 = vunpack.c.l.b16 %v1057
      %v1124 = vunpack.c.h.b16 %v1057
      %v1125 = vunpack.c.l.b16 %v1058
      %v1126 = vunpack.c.h.b16 %v1058
      %v1127 = vunpack.c.l.b16 %v1059
      %v1128 = vunpack.c.h.b16 %v1059
      %v1129 = vunpack.c.l.b16 %v1060
      %v1130 = vunpack.c.h.b16 %v1060
      %v1131 = vunpack.c.l.b16 %v1061
      %v1132 = vunpack.c.h.b16 %v1061
      %v1133 = vunpack.c.l.b16 %v1062
      %v1134 = vunpack.c.h.b16 %v1062
      %v1135 = vunpack.c.l.b16 %v1063
      %v1136 = vunpack.c.h.b16 %v1063
      %v1137 = vunpack.c.l.b16 %v1064
      %v1138 = vunpack.c.h.b16 %v1064
      %v1139 = vunpack.c.l.b16 %v1065
      %v1140 = vunpack.c.h.b16 %v1065
      %v1141 = vunpack.c.l.b16 %v1066
      %v1142 = vunpack.c.h.b16 %v1066
      %v1143 = vunpack.c.l.b16 %v1067
      %v1144 = vunpack.c.h.b16 %v1067
      %v1145 = vunpack.c.l.b16 %v1068
      %v1146 = vunpack.c.h.b16 %v1068
      %v1147 = vunpack.c.l.b16 %v1069
      %v1148 = vunpack.c.h.b16 %v1069
      %v1149 = vunpack.c.l.b16 %v1070
      %v1150 = vunpack.c.h.b16 %v1070
      %v1151 = vunpack.c.l.b16 %v1071
      %v1152 = vunpack.c.h.b16 %v1071
      %v1153 = vunpack.c.l.b16 %v1072
      %v1154 = vunpack.c.h.b16 %v1072
      %v1155 = vunpack.c.l.b16 %v1073
      %v1156 = vunpack.c.h.b16 %v1073
      %v1157 = vunpack.c.l.b16 %v1074
      %v1158 = vunpack.c.h.b16 %v1074
      %v1159 = vunpack.c.l.b16 %v1075
      %v1160 = vunpack.c.h.b16 %v1075
      %v1161 = vunpack.c.l.b16 %v1076
      %v1162 = vunpack.c.h.b16 %v1076
      %v1163 = vunpack.c.l.b16 %v1077
      %v1164 = vunpack.c.h.b16 %v1077
      %v1165 = vunpack.c.l.b16 %v1078
      %v1166 = vunpack.c.h.b16 %v1078
      %v1167 = vunpack.c.l.b16 %v1079
      %v1168 = vunpack.c.h.b16 %v1079
      %v1169 = vunpack.c.l.b16 %v1080
      %v1170 = vunpack.c.h.b16 %v1080
      %v1171 = vunpack.c.l.b16 %v1081
      %v1172 = vunpack.c.h.b16 %v1081
      %v1173 = vunpack.c.l.b16 %v1082
      %v1174 = vunpack.c.h.b16 %v1082
      %v1175 = vunpack.c.l.b16 %v1083
      %v1176 = vunpack.c.h.b16 %v1083
      %v1177 = vunpack.c.l.b16 %v1084
      %v1178 = vunpack.c.h.b16 %v1084
      %v1179 = vunpack.c.l.b16 %v1085
      %v1180 = vunpack.c.h.b16 %v1085
      %v1181 = vunpack.c.l.b16 %v1086
      %v1182 = vunpack.c.h.b16 %v1086
      %v1183 = vpack.c.b16 %v1123, %v1119
      %v1184 = vpack.c.b16 %v1124, %v1120
      %v1185 = vpack.c.b16 %v1125, %v1121
      %v1186 = vpack.c.b16 %v1126, %v1122
      %v1187 = vpack.c.b16 %v1131, %v1127
      %v1188 = vpack.c.b16 %v1132, %v1128
      %v1189 = vpack.c.b16 %v1133, %v1129
      %v1190 = vpack.c.b16 %v1134, %v1130
      %v1191 = vpack.c.b16 %v1139, %v1135
      %v1192 = vpack.c.b16 %v1140, %v1136
      %v1193 = vpack.c.b16 %v1141, %v1137
      %v1194 = vpack.c.b16 %v1142, %v1138
      %v1195 = vpack.c.b16 %v1147, %v1143
      %v1196 = vpack.c.b16 %v1148, %v1144
      %v1197 = vpack.c.b16 %v1149, %v1145
      %v1198 = vpack.c.b16 %v1150, %v1146
      %v1199 = vpack.c.b16 %v1155, %v1151
      %v1200 = vpack.c.b16 %v1156, %v1152
      %v1201 = vpack.c.b16 %v1157, %v1153
      %v1202 = vpack.c.b16 %v1158, %v1154
      %v1203 = vpack.c.b16 %v1163, %v1159
      %v1204 = vpack.c.b16 %v1164, %v1160
      %v1205 = vpack.c.b16 %v1165, %v1161
      %v1206 = vpack.c.b16 %v1166, %v1162
      %v1207 = vpack.c.b16 %v1171, %v1167
      %v1208 = vpack.c.b16 %v1172, %v1168
      %v1209 = vpack.c.b16 %v1173, %v1169
      %v1210 = vpack.c.b16 %v1174, %v1170
      %v1211 = vpack.c.b16 %v1179, %v1175
      %v1212 = vpack.c.b16 %v1180, %v1176
      %v1213 = vpack.c.b16 %v1181, %v1177
      %v1214 = vpack.c.b16 %v1182, %v1178
      %1247 = vmatpush.bf16.msra.mxu0 %v1211
      %1248 = vmatpush.bf16.msra.mxu0 %v1207
      %1249 = vmatpush.bf16.msra.mxu0 %v1203
      %1250 = vmatpush.bf16.msra.mxu0 %v1199
      %1251 = vmatpush.bf16.msra.mxu0 %v1195
      %1252 = vmatpush.bf16.msra.mxu0 %v1191
      %1253 = vmatpush.bf16.msra.mxu0 %v1187
      %1254 = vmatpush.bf16.msra.mxu0 %v1183
      %1255 = vmatmul.bf16.gmra.mxu0 %v1054
      %v1256 = vpop.f32.mrf.mxu0
      %v1257 = vadd.f32 0.0, %v1256
      %v1258 = vpop.f32.mrf.mxu0
      %1259 = vdwg.mxu0
      %1260 = vmatpush.bf16.msra.mxu0 %v1212
      %1261 = vmatpush.bf16.msra.mxu0 %v1208
      %1262 = vmatpush.bf16.msra.mxu0 %v1204
      %1263 = vmatpush.bf16.msra.mxu0 %v1200
      %1264 = vmatpush.bf16.msra.mxu0 %v1196
      %1265 = vmatpush.bf16.msra.mxu0 %v1192
      %1266 = vmatpush.bf16.msra.mxu0 %v1188
      %1267 = vmatpush.bf16.msra.mxu0 %v1184
      %1268 = vmatmul.bf16.gmra.mxu0 %v1054
      %v1269 = vpop.f32.mrf.mxu0
      %v1270 = vadd.f32 0.0, %v1269
      %v1271 = vpop.f32.mrf.mxu0
      %1272 = vdwg.mxu0
      %1273 = vmatpush.bf16.msra.mxu0 %v1213
      %1274 = vmatpush.bf16.msra.mxu0 %v1209
      %1275 = vmatpush.bf16.msra.mxu0 %v1205
      %1276 = vmatpush.bf16.msra.mxu0 %v1201
      %1277 = vmatpush.bf16.msra.mxu0 %v1197
      %1278 = vmatpush.bf16.msra.mxu0 %v1193
      %1279 = vmatpush.bf16.msra.mxu0 %v1189
      %1280 = vmatpush.bf16.msra.mxu0 %v1185
      %1281 = vmatmul.bf16.gmra.mxu0 %v1054
      %v1282 = vpop.f32.mrf.mxu0
      %v1283 = vadd.f32 0.0, %v1282
      %v1284 = vpop.f32.mrf.mxu0
      %1285 = vdwg.mxu0
      %1286 = vmatpush.bf16.msra.mxu0 %v1214
      %1287 = vmatpush.bf16.msra.mxu0 %v1210
      %1288 = vmatpush.bf16.msra.mxu0 %v1206
      %1289 = vmatpush.bf16.msra.mxu0 %v1202
      %1290 = vmatpush.bf16.msra.mxu0 %v1198
      %1291 = vmatpush.bf16.msra.mxu0 %v1194
      %1292 = vmatpush.bf16.msra.mxu0 %v1190
      %1293 = vmatpush.bf16.msra.mxu0 %v1186
      %1294 = vmatmul.bf16.gmra.mxu0 %v1054
      %v1295 = vpop.f32.mrf.mxu0
      %v1296 = vadd.f32 0.0, %v1295
      %v1297 = vpop.f32.mrf.mxu0
      %1298 = vdwg.mxu0
      %v1299 = vadd.f32 %v1050, %v1257
      %v1300 = vadd.f32 %v1051, %v1270
      %v1301 = vadd.f32 %v1052, %v1283
      %v1302 = vadd.f32 %v1053, %v1296
      %v1303 = vxor.u32 %v1299, 2147483648
      %v1304 = vmul.f32 %v1303, 1.442695
      %v1305 = vpow.pop %v1304
      %v1306 = vadd.f32 %v1305, 1.0
      %v1307 = vrcp.pop %v1306
      %v1308 = vmul.f32 %v1306, %v1307
      %v1309 = vsub.f32 1.0, %v1308
      %v1310 = vmul.f32 %v1307, %v1309
      %v1311 = vadd.f32 %v1307, %v1310
      %vm1312 = vweird.f32 %v1306
      %vm1313 = vweird.f32 %v1307
      %vm1314 = vmor %vm1312, %vm1313
      %v1315 = vsel %vm1314, %v1307, %v1311
      %v1316 = vand.u32 2147483647, %v1306
      %vm1317 = vcmp.eq.f32.partialorder %v1316, 8.507059e+37
      %v1318 = vand.u32 %v1306, 2147483648
      %v1319 = vor.u32 1.1754944e-38, %v1318
      %v1320 = vsel %vm1317, %v1319, %v1315
      %v1321 = vmul.f32 1.0, %v1320
      %v1322 = vxor.u32 %v1300, 2147483648
      %v1323 = vmul.f32 %v1322, 1.442695
      %v1324 = vpow.pop %v1323
      %v1325 = vadd.f32 %v1324, 1.0
      %v1326 = vrcp.pop %v1325
      %v1327 = vmul.f32 %v1325, %v1326
      %v1328 = vsub.f32 1.0, %v1327
      %v1329 = vmul.f32 %v1326, %v1328
      %v1330 = vadd.f32 %v1326, %v1329
      %vm1331 = vweird.f32 %v1325
      %vm1332 = vweird.f32 %v1326
      %vm1333 = vmor %vm1331, %vm1332
      %v1334 = vsel %vm1333, %v1326, %v1330
      %v1335 = vand.u32 2147483647, %v1325
      %vm1336 = vcmp.eq.f32.partialorder %v1335, 8.507059e+37
      %v1337 = vand.u32 %v1325, 2147483648
      %v1338 = vor.u32 1.1754944e-38, %v1337
      %v1339 = vsel %vm1336, %v1338, %v1334
      %v1340 = vmul.f32 1.0, %v1339
      %v1341 = vtanh.pop %v1301
      %v1342 = vxor.u32 %v1302, 2147483648
      %v1343 = vmul.f32 %v1342, 1.442695
      %v1344 = vpow.pop %v1343
      %v1345 = vadd.f32 %v1344, 1.0
      %v1346 = vrcp.pop %v1345
      %v1347 = vmul.f32 %v1345, %v1346
      %v1348 = vsub.f32 1.0, %v1347
      %v1349 = vmul.f32 %v1346, %v1348
      %v1350 = vadd.f32 %v1346, %v1349
      %vm1351 = vweird.f32 %v1345
      %vm1352 = vweird.f32 %v1346
      %vm1353 = vmor %vm1351, %vm1352
      %v1354 = vsel %vm1353, %v1346, %v1350
      %v1355 = vand.u32 2147483647, %v1345
      %vm1356 = vcmp.eq.f32.partialorder %v1355, 8.507059e+37
      %v1357 = vand.u32 %v1345, 2147483648
      %v1358 = vor.u32 1.1754944e-38, %v1357
      %v1359 = vsel %vm1356, %v1358, %v1354
      %v1360 = vmul.f32 1.0, %v1359
      %v1361 = vmul.f32 %v1340, %v1043
      %v1362 = vmul.f32 %v1321, %v1341
      %v1363 = vadd.f32 %v1361, %v1362
      %v1364 = vtanh.pop %v1363
      %v1365 = vmul.f32 %v1360, %v1364
      %s1366 = sld [smem:[#allocation11 + %s1037]]
      %v1367 = vstv %s1366
      %v1368 = vmul.f32 %v1365, %v1367
      %s1369 = sld [smem:[#allocation12 + %s1037]]
      %v1370 = vstv %s1369
      %v1371 = vadd.f32 %v1368, %v1370
      %s1372 = scalar_lea.vmem [#allocation3], %s1044
      %1373 = vst [vmem:[%s1372] sm:$0xff] %v1371
    $region77: #{dalstm_forward.1} parent=1 // loop_footer
      %s1041 = sadd.s32 1, %s1037
    $region78: #{dalstm_forward.1} parent=1 // loop_footer_branch
      %1036 = sbr.rel target = $region74
    $region79: #{dalstm_forward.1} parent=1 // loop_exit
      _
    %s1374 = sld [smem:[#allocation11 + $0x7]]
    %v1375 = vstv %s1374
    %v1376 = vmul.f32 %v1042, %v1375
    %s1377 = sld [smem:[#allocation12 + $0x7]]
    %v1378 = vstv %s1377
    %v1379 = vadd.f32 %v1376, %v1378
    %v1380 = vld [vmem:[%s9] sm:$0xff]
    %v1381 = vld [vmem:[%s9 + $0x8] sm:$0xff]
    %v1382 = vld [vmem:[%s9 + $0x10] sm:$0xff]
    %v1383 = vld [vmem:[%s9 + $0x18] sm:$0xff]
    %v1384 = vld [vmem:[%s9 + $0x20] sm:$0xff]
    %v1385 = vld [vmem:[%s9 + $0x28] sm:$0xff]
    %v1386 = vld [vmem:[%s9 + $0x30] sm:$0xff]
    %v1387 = vld [vmem:[%s9 + $0x38] sm:$0xff]
    %v1388 = vld [vmem:[%s9 + $0x40] sm:$0xff]
    %v1389 = vld [vmem:[%s9 + $0x48] sm:$0xff]
    %v1390 = vld [vmem:[%s9 + $0x50] sm:$0xff]
    %v1391 = vld [vmem:[%s9 + $0x58] sm:$0xff]
    %v1392 = vld [vmem:[%s9 + $0x60] sm:$0xff]
    %v1393 = vld [vmem:[%s9 + $0x68] sm:$0xff]
    %v1394 = vld [vmem:[%s9 + $0x70] sm:$0xff]
    %v1395 = vld [vmem:[%s9 + $0x78] sm:$0xff]
    %v1396 = vld [vmem:[#allocation4] sm:$0x1]
    %v1398 = vperm.slane %v1396, 0
    %1400 = vmatpush.msra.mxu0 %v1395
    %1401 = vmatpush.msra.mxu0 %v1394
    %1402 = vmatpush.msra.mxu0 %v1393
    %1403 = vmatpush.msra.mxu0 %v1392
    %1404 = vmatpush.msra.mxu0 %v1391
    %1405 = vmatpush.msra.mxu0 %v1390
    %1406 = vmatpush.msra.mxu0 %v1389
    %1407 = vmatpush.msra.mxu0 %v1388
    %1408 = vmatpush.msra.mxu0 %v1387
    %1409 = vmatpush.msra.mxu0 %v1386
    %1410 = vmatpush.msra.mxu0 %v1385
    %1411 = vmatpush.msra.mxu0 %v1384
    %1412 = vmatpush.msra.mxu0 %v1383
    %1413 = vmatpush.msra.mxu0 %v1382
    %1414 = vmatpush.msra.mxu0 %v1381
    %1415 = vmatpush.msra.mxu0 %v1380
    %1416 = vmatmul.f32.gmra.mxu0 %v1379
    %v1417 = vpop.f32.mrf.mxu0
    %v1418 = vadd.f32 %v1398, %v1417
    %1419 = vdwg.mxu0
    %vm1420 = vcmask 7168
    %1421 = vst.msk [vmem:[%s11] sm:$0xff] %vm1420, %v1418
    // Predicated region
    $region80: #{dalstm_forward.1} parent=1 // pred_check
      _
    $region81: #{dalstm_forward.1} parent=1 // pred_check_branch
      %1423 = sbr.rel (0) target = $region83
    $region82: #{dalstm_forward.1} parent=1 // pred_region
      _
    $region83: #{dalstm_forward.1} parent=1 // pred_fallthru
      _
    // Predicated region
    $region84: #{dalstm_forward.1} parent=1 // pred_check
      _
    $region85: #{dalstm_forward.1} parent=1 // pred_check_branch
      %1425 = sbr.rel (0) target = $region87
    $region86: #{dalstm_forward.1} parent=1 // pred_region
      _
    $region87: #{dalstm_forward.1} parent=1 // pred_fallthru
      _
    %1426 = vsyncpa [#allocation6], 1
    %1427 = vsyncpa [#allocation9], 1
    %1428 = vsyncpa [#allocation7], 1
    %1429 = vsyncpa [#allocation13], 1

</llo_original>
